<compile_context>
chip_gen: v6e
topology: v6e:2x2x1
jax: 0.10.0
libtpu: 0.0.40
codegen_flags: <defaults>
</compile_context>

<pallas_src>
import functools

import jax
import jax.numpy as jnp
import numpy as np
from jax.experimental import pallas as pl
from jax.experimental.pallas import tpu as pltpu


# ----------------------------------------------------------------------------
# Shared per-layer math. Used by the Pallas kernel on loaded VMEM values AND
# by the pure-JAX "kernel math" reference, so both compute the same expression.
# ----------------------------------------------------------------------------
def _graph_conv_layer(adj, h, w, b, *, relu_bn, mxu_dtype):
    """One GraphConv (+ optional ReLU + training-mode BatchNorm1d(num_nodes)).

    adj: (B, N, N) mxu_dtype    h: (B, N, din) f32 (or mxu_dtype for the input x)
    w:   (din, dout) mxu_dtype  b: (1, dout) f32
    Returns y: (B, N, dout) f32.
    """
    B, N, _ = h.shape
    din, dout = w.shape
    BN = B * N

    # Padded-slab heuristic: the dominant adj matmul's MXU cost scales with the
    # number of padded 128-lane output slabs, so contract whichever feature dim
    # needs fewer slabs against adj (ties -> natural adj @ h @ W ordering).
    if -(-din // 128) <= -(-dout // 128):
        t = jnp.einsum("bij,bjd->bid", adj, h.astype(mxu_dtype),
                       preferred_element_type=jnp.float32)
        y = jnp.dot(t.reshape(BN, din).astype(mxu_dtype), w,
                    preferred_element_type=jnp.float32).reshape(B, N, dout)
    else:
        t = jnp.dot(h.reshape(BN, din).astype(mxu_dtype), w,
                    preferred_element_type=jnp.float32)
        y = jnp.einsum("bij,bjd->bid", adj,
                       t.reshape(B, N, dout).astype(mxu_dtype),
                       preferred_element_type=jnp.float32)
    y = y + b

    # F.normalize(y, p=2, dim=2): y / max(||y||_2, 1e-12)  (rsqrt -> EUP slot).
    sq = jnp.sum(y * y, axis=-1, keepdims=True)
    y = y * jax.lax.rsqrt(jnp.maximum(sq, 1e-24))

    if relu_bn:
        # ReLU, then BatchNorm1d(num_nodes) training stats: per node index over
        # (batch, feature). Single fused pass: var = E[y^2] - mean^2 (y >= 0
        # post-ReLU; sums computed in f32).
        y = jnp.maximum(y, 0.0)
        inv_cnt = 1.0 / (B * dout)
        s1 = jnp.sum(y, axis=(0, 2), keepdims=True)
        s2 = jnp.sum(y * y, axis=(0, 2), keepdims=True)
        mean = s1 * inv_cnt
        var = jnp.maximum(s2 * inv_cnt - mean * mean, 0.0)
        y = (y - mean) * jax.lax.rsqrt(var + 1e-5)
    return y


# ----------------------------------------------------------------------------
# Fused Pallas kernel: entire GcnEncoderNode forward in one call.
# ----------------------------------------------------------------------------
def _fused_gcn_kernel(*refs, num_layers):
    """refs = (x, adj, w_0, b_0, ..., w_{L-1}, b_{L-1}, w_pred, b_pred, out).

    out has shape (label_dim, B*N): the prediction is accumulated layer by
    layer from static slices of w_pred (the concatenated embedding is never
    materialized) and stored transposed so the writeback is lane-dense instead
    of label_dim-wide masked stores.
    """
    x_ref, adj_ref = refs[0], refs[1]
    conv_refs = refs[2:2 + 2 * num_layers]
    w_pred_ref = refs[2 + 2 * num_layers]
    b_pred_ref = refs[3 + 2 * num_layers]
    out_ref = refs[-1]

    adj = adj_ref[...]                      # (B, N, N) mxu dtype, loaded once
    mxu_dtype = adj.dtype
    h = x_ref[...]                          # (B, N, Din) mxu dtype
    B, N, _ = adj.shape
    BN = B * N
    w_pred = w_pred_ref[...]                # (pred_input_dim, label_dim)

    pred = None                             # (B*N, label_dim) f32 accumulator
    off = 0
    for layer in range(num_layers):
        w = conv_refs[2 * layer][...]       # (din, dout) mxu dtype
        b = conv_refs[2 * layer + 1][...]   # (1, dout) f32
        dout = w.shape[1]
        y = _graph_conv_layer(adj, h, w, b,
                              relu_bn=(layer < num_layers - 1),
                              mxu_dtype=mxu_dtype)
        # This layer's static slice of the prediction Linear, as one
        # (B*N, dout) x (dout, label_dim) matmul (no broadcast weight copies).
        contrib = jnp.dot(y.reshape(BN, dout).astype(mxu_dtype),
                          w_pred[off:off + dout, :],
                          preferred_element_type=jnp.float32)
        pred = contrib if pred is None else pred + contrib
        off += dout
        h = y

    pred = pred + b_pred_ref[...]           # bias added once, at the end
    # Lane-dense (label_dim, B*N) store; wrapper undoes the transpose.
    out_ref[...] = pred.T.astype(out_ref.dtype)


# ----------------------------------------------------------------------------
# Forward wrapper
# ----------------------------------------------------------------------------
def gcn_encoder_node_forward(x, adj, params, num_layers,
                             mxu_dtype=jnp.bfloat16):
    """pred, adj_att = GcnEncoderNode.forward(x, adj)  (batch_num_nodes=None)."""
    # TODO(synk): embedding_mask path (batch_num_nodes != None) builds the mask
    # with a host-side Python loop (construct_mask); not implemented here.
    B, N, input_dim = x.shape
    label_dim = params["w_pred"].shape[1]
    BN = B * N

    # Everything that only feeds the MXU is cast to mxu_dtype already in HBM
    # (halves adj/x DMA bytes and VMEM footprint). Biases and all elementwise /
    # normalize / BN math stay f32 inside the kernel.
    args = [x.astype(mxu_dtype), adj.astype(mxu_dtype),
            params["w_first"].astype(mxu_dtype),
            params["b_first"].reshape(1, -1).astype(jnp.float32)]
    for i in range(num_layers - 2):
        args += [params["w_block"][i].astype(mxu_dtype),
                 params["b_block"][i].reshape(1, -1).astype(jnp.float32)]
    args += [params["w_last"].astype(mxu_dtype),
             params["b_last"].reshape(1, -1).astype(jnp.float32)]
    args += [params["w_pred"].astype(mxu_dtype),
             params["b_pred"].reshape(1, -1).astype(jnp.float32)]

    # Size the VMEM budget from the actual buffers instead of relying on the
    # default scoped limit (16/32 MiB), clamped below physical VMEM capacity.
    in_bytes = sum(int(np.prod(a.shape)) * a.dtype.itemsize for a in args)
    max_feat = max(input_dim, params["w_first"].shape[1],
                   params["w_last"].shape[1])
    act_bytes = 8 * B * N * max_feat * 4          # live f32 activations, headroom
    est_bytes = in_bytes + BN * label_dim * 4 + act_bytes + (4 << 20)
    try:
        phys_vmem = int(pltpu.get_tpu_info().vmem_capacity_bytes)
    except Exception:
        phys_vmem = 64 * 1024 * 1024              # v7x floor; safe everywhere
    vmem_limit = int(min(0.9 * phys_vmem,
                         max(2 * est_bytes, 32 * 1024 * 1024)))

    vmem_spec = pl.BlockSpec(memory_space=pltpu.MemorySpace.VMEM)
    # Single fused invocation: adj, the weights and the running activation stay
    # resident in VMEM; no per-layer HBM round trips or launch overhead.
    # TODO(synk): for large N / B add a grid (tile batch with a cross-core BN
    # stat reduction, or tile adj rows) to pipeline DMA and use both v7x cores.
    out_t = pl.pallas_call(
        functools.partial(_fused_gcn_kernel, num_layers=num_layers),
        out_shape=jax.ShapeDtypeStruct((label_dim, BN), jnp.float32),
        in_specs=[vmem_spec] * len(args),
        out_specs=vmem_spec,
        compiler_params=pltpu.CompilerParams(vmem_limit_bytes=vmem_limit),
    )(*args)

    # Kernel stores the prediction lane-dense as (label_dim, B*N); undo here.
    pred = out_t.T.reshape(B, N, label_dim)

    # att=False -> every layer's adj_att is the unmodified adj; lazy broadcast
    # instead of stacking num_layers duplicated copies through HBM.
    adj_att = jnp.broadcast_to(adj[..., None], adj.shape + (num_layers,))
    return pred, adj_att


# ----------------------------------------------------------------------------
# Parameters (same init scheme as the PyTorch module)
# ----------------------------------------------------------------------------
def xavier_uniform(key, shape, gain):
    fan_in, fan_out = shape
    limit = gain * np.sqrt(6.0 / (fan_in + fan_out))
    return jax.random.uniform(key, shape, jnp.float32, -limit, limit)


def init_params(key, input_dim, hidden_dim, embedding_dim, label_dim, num_layers):
    gain = float(np.sqrt(2.0))  # nn.init.calculate_gain('relu')
    keys = jax.random.split(key, num_layers + 2)
    params = {}
    params["w_first"] = xavier_uniform(keys[0], (input_dim, hidden_dim), gain)
    params["b_first"] = jnp.zeros((hidden_dim,), jnp.float32)
    params["w_block"] = []
    params["b_block"] = []
    for i in range(num_layers - 2):
        params["w_block"].append(
            xavier_uniform(keys[1 + i], (hidden_dim, hidden_dim), gain))
        params["b_block"].append(jnp.zeros((hidden_dim,), jnp.float32))
    params["w_last"] = xavier_uniform(keys[num_layers - 1],
                                      (hidden_dim, embedding_dim), gain)
    params["b_last"] = jnp.zeros((embedding_dim,), jnp.float32)

    pred_input_dim = hidden_dim * (num_layers - 1) + embedding_dim
    k1, k2 = jax.random.split(keys[num_layers])
    bound = 1.0 / np.sqrt(pred_input_dim)
    params["w_pred"] = jax.random.uniform(
        k1, (pred_input_dim, label_dim), jnp.float32, -bound, bound)
    params["b_pred"] = jax.random.uniform(
        k2, (label_dim,), jnp.float32, -bound, bound)
    return params


# ----------------------------------------------------------------------------
# References for the sanity check.
# ----------------------------------------------------------------------------
def _ref_forward_kernel_math(x, adj, params, num_layers, mxu_dtype=jnp.bfloat16):
    """Pure-JAX mirror of the kernel math (same casts / same association)."""
    adj_m = adj.astype(mxu_dtype)
    ws = [params["w_first"]] + list(params["w_block"]) + [params["w_last"]]
    bs = [params["b_first"]] + list(params["b_block"]) + [params["b_last"]]
    B, N, _ = x.shape
    h = x.astype(mxu_dtype)
    w_pred = params["w_pred"].astype(mxu_dtype)
    pred, off = None, 0
    for l in range(num_layers):
        y = _graph_conv_layer(adj_m, h, ws[l].astype(mxu_dtype),
                              bs[l].reshape(1, -1),
                              relu_bn=(l < num_layers - 1),
                              mxu_dtype=mxu_dtype)
        d = y.shape[-1]
        c = jnp.dot(y.reshape(B * N, d).astype(mxu_dtype),
                    w_pred[off:off + d, :], preferred_element_type=jnp.float32)
        pred = c if pred is None else pred + c
        off += d
        h = y
    pred = pred + params["b_pred"].reshape(1, -1)
    return pred.reshape(B, N, -1)


def _ref_graph_conv(adj, x, w, b, apply_relu):
    y = jnp.einsum("bij,bjd->bid", adj, x)
    y = jnp.einsum("bid,de->bie", y, w) + b
    norm = jnp.sqrt(jnp.sum(y * y, axis=-1, keepdims=True))
    y = y / jnp.maximum(norm, 1e-12)
    return jnp.maximum(y, 0.0) if apply_relu else y


def _ref_bn(x):
    m = jnp.mean(x, axis=(0, 2), keepdims=True)
    v = jnp.mean((x - m) ** 2, axis=(0, 2), keepdims=True)
    return (x - m) / jnp.sqrt(v + 1e-5)


def _ref_forward_f32(x, adj, params, num_layers):
    """f32 module semantics (matches the PyTorch forward exactly)."""
    h = _ref_bn(_ref_graph_conv(adj, x, params["w_first"], params["b_first"], True))
    x_all = [h]
    for i in range(num_layers - 2):
        h = _ref_bn(_ref_graph_conv(adj, h, params["w_block"][i],
                                    params["b_block"][i], True))
        x_all.append(h)
    x_all.append(_ref_graph_conv(adj, h, params["w_last"], params["b_last"], False))
    xt = jnp.concatenate(x_all, axis=2)
    pred = jnp.einsum("bnd,dl->bnl", xt, params["w_pred"]) + params["b_pred"]
    return pred, jnp.stack([adj] * num_layers, axis=3)


# ----------------------------------------------------------------------------
if __name__ == "__main__":
    B, N = 2, 16
    input_dim, hidden_dim, embedding_dim, label_dim = 8, 32, 16, 4
    num_layers = 3

    key = jax.random.PRNGKey(0)
    kx, ka, kp = jax.random.split(key, 3)
    x = jax.random.normal(kx, (B, N, input_dim), jnp.float32)
    adj_raw = jax.random.uniform(ka, (B, N, N), jnp.float32)
    adj = 0.5 * (adj_raw + jnp.transpose(adj_raw, (0, 2, 1)))   # symmetric adj

    params = init_params(kp, input_dim, hidden_dim, embedding_dim,
                         label_dim, num_layers)

    pred_ref, adj_att_ref = _ref_forward_f32(x, adj, params, num_layers)

    # 1) f32-MXU path: exact check against the f32 module reference.
    pred32, adj_att = gcn_encoder_node_forward(x, adj, params, num_layers,
                                               mxu_dtype=jnp.float32)
    pred32 = jax.block_until_ready(pred32)
    adj_att = jax.block_until_ready(adj_att)
    np.testing.assert_allclose(np.asarray(pred32), np.asarray(pred_ref),
                               rtol=1e-4, atol=1e-4)
    np.testing.assert_allclose(np.asarray(adj_att), np.asarray(adj_att_ref))

    # 2) bf16-MXU path (the fast default on v5e/v6e/v7x): tight check against a
    #    pure-JAX mirror of the kernel math, loose check against f32 semantics.
    pred_bf, _ = gcn_encoder_node_forward(x, adj, params, num_layers)
    pred_bf = jax.block_until_ready(pred_bf)
    pred_mirror = _ref_forward_kernel_math(x, adj, params, num_layers)
    np.testing.assert_allclose(np.asarray(pred_bf), np.asarray(pred_mirror),
                               rtol=1e-2, atol=1e-2)
    np.testing.assert_allclose(np.asarray(pred_bf), np.asarray(pred_ref),
                               rtol=1e-1, atol=1e-1)

    assert pred32.shape == (B, N, label_dim)
    assert pred_bf.shape == (B, N, label_dim)
    assert adj_att.shape == (B, N, N, num_layers)
    print("KERNEL_OK")
</pallas_src>

<mosaic_0001>
module attributes {stable_mosaic.version = 11 : i64} {
  func.func @_fused_gcn_kernel(%arg0: memref<2x16x8xf32, #tpu.memory_space<vmem>>, %arg1: memref<2x16x16xf32, #tpu.memory_space<vmem>>, %arg2: memref<8x32xf32, #tpu.memory_space<vmem>>, %arg3: memref<1x32xf32, #tpu.memory_space<vmem>>, %arg4: memref<32x32xf32, #tpu.memory_space<vmem>>, %arg5: memref<1x32xf32, #tpu.memory_space<vmem>>, %arg6: memref<32x16xf32, #tpu.memory_space<vmem>>, %arg7: memref<1x16xf32, #tpu.memory_space<vmem>>, %arg8: memref<80x4xf32, #tpu.memory_space<vmem>>, %arg9: memref<1x4xf32, #tpu.memory_space<vmem>>, %arg10: memref<4x32xf32, #tpu.memory_space<vmem>>) attributes {dimension_semantics = [], scalar_prefetch = 0 : i64, scratch_operands = 0 : i64, tpu.core_type = #tpu.core_type<tc>} {
    %c0 = arith.constant 0 : index
    %c0_0 = arith.constant 0 : index
    %c0_1 = arith.constant 0 : index
    %0 = vector.load %arg1[%c0, %c0_0, %c0_1] : memref<2x16x16xf32, #tpu.memory_space<vmem>>, vector<2x16x16xf32>
    %c0_2 = arith.constant 0 : index
    %c0_3 = arith.constant 0 : index
    %c0_4 = arith.constant 0 : index
    %1 = vector.load %arg0[%c0_2, %c0_3, %c0_4] : memref<2x16x8xf32, #tpu.memory_space<vmem>>, vector<2x16x8xf32>
    %c0_5 = arith.constant 0 : index
    %c0_6 = arith.constant 0 : index
    %2 = vector.load %arg8[%c0_5, %c0_6] : memref<80x4xf32, #tpu.memory_space<vmem>>, vector<80x4xf32>
    %c0_7 = arith.constant 0 : index
    %c0_8 = arith.constant 0 : index
    %3 = vector.load %arg2[%c0_7, %c0_8] : memref<8x32xf32, #tpu.memory_space<vmem>>, vector<8x32xf32>
    %c0_9 = arith.constant 0 : index
    %c0_10 = arith.constant 0 : index
    %4 = vector.load %arg3[%c0_9, %c0_10] : memref<1x32xf32, #tpu.memory_space<vmem>>, vector<1x32xf32>
    "tpu.trace_start"() <{level = 10 : i32, message = "bij,bjd->bid"}> : () -> ()
    %cst = arith.constant dense<0.000000e+00> : vector<2x16x8xf32>
    %5 = tpu.matmul %0, %1, %cst {dimension_numbers = #tpu.dot_dimension_numbers<[2], [1], [1], [2], [0, 0, 0, 1, 1, 2], [0], [0]>} : vector<2x16x16xf32>, vector<2x16x8xf32>, vector<2x16x8xf32> -> vector<2x16x8xf32>
    "tpu.trace_stop"() : () -> ()
    %6 = vector.shape_cast %5 : vector<2x16x8xf32> to vector<32x8xf32>
    %cst_11 = arith.constant dense<0.000000e+00> : vector<32x32xf32>
    %7 = tpu.matmul %6, %3, %cst_11 {dimension_numbers = #tpu.dot_dimension_numbers<[1], [0], [0], [1], [0, 0, 1, 1], [], []>} : vector<32x8xf32>, vector<8x32xf32>, vector<32x32xf32> -> vector<32x32xf32>
    %8 = vector.shape_cast %7 : vector<32x32xf32> to vector<2x16x32xf32>
    %9 = vector.shape_cast %4 : vector<1x32xf32> to vector<1x1x32xf32>
    %10 = vector.broadcast %9 : vector<1x1x32xf32> to vector<2x16x32xf32>
    %11 = arith.addf %8, %10 : vector<2x16x32xf32>
    %12 = arith.mulf %11, %11 : vector<2x16x32xf32>
    %cst_12 = arith.constant dense<0.000000e+00> : vector<2x16xf32>
    %13 = vector.multi_reduction <add>, %12, %cst_12 [2] : vector<2x16x32xf32> to vector<2x16xf32>
    %14 = vector.shape_cast %13 : vector<2x16xf32> to vector<2x16x1xf32>
    %cst_13 = arith.constant 1.000000e-24 : f32
    %15 = vector.broadcast %cst_13 : f32 to vector<2x16x1xf32>
    %16 = arith.maximumf %14, %15 : vector<2x16x1xf32>
    %17 = math.rsqrt %16 : vector<2x16x1xf32>
    %18 = vector.broadcast %17 : vector<2x16x1xf32> to vector<2x16x32xf32>
    %19 = arith.mulf %11, %18 : vector<2x16x32xf32>
    %cst_14 = arith.constant 0.000000e+00 : f32
    %20 = vector.broadcast %cst_14 : f32 to vector<2x16x32xf32>
    %21 = arith.maximumf %19, %20 : vector<2x16x32xf32>
    %cst_15 = arith.constant dense<0.000000e+00> : vector<16xf32>
    %22 = vector.multi_reduction <add>, %21, %cst_15 [0, 2] : vector<2x16x32xf32> to vector<16xf32>
    %23 = vector.shape_cast %22 : vector<16xf32> to vector<1x16x1xf32>
    %24 = arith.mulf %21, %21 : vector<2x16x32xf32>
    %cst_16 = arith.constant dense<0.000000e+00> : vector<16xf32>
    %25 = vector.multi_reduction <add>, %24, %cst_16 [0, 2] : vector<2x16x32xf32> to vector<16xf32>
    %26 = vector.shape_cast %25 : vector<16xf32> to vector<1x16x1xf32>
    %cst_17 = arith.constant 1.562500e-02 : f32
    %27 = vector.broadcast %cst_17 : f32 to vector<1x16x1xf32>
    %28 = arith.mulf %23, %27 : vector<1x16x1xf32>
    %cst_18 = arith.constant 1.562500e-02 : f32
    %29 = vector.broadcast %cst_18 : f32 to vector<1x16x1xf32>
    %30 = arith.mulf %26, %29 : vector<1x16x1xf32>
    %31 = arith.mulf %28, %28 : vector<1x16x1xf32>
    %32 = arith.subf %30, %31 : vector<1x16x1xf32>
    %cst_19 = arith.constant 0.000000e+00 : f32
    %33 = vector.broadcast %cst_19 : f32 to vector<1x16x1xf32>
    %34 = arith.maximumf %32, %33 : vector<1x16x1xf32>
    %35 = vector.broadcast %28 : vector<1x16x1xf32> to vector<2x16x32xf32>
    %36 = arith.subf %21, %35 : vector<2x16x32xf32>
    %cst_20 = arith.constant 9.99999974E-6 : f32
    %37 = vector.broadcast %cst_20 : f32 to vector<1x16x1xf32>
    %38 = arith.addf %34, %37 : vector<1x16x1xf32>
    %39 = math.rsqrt %38 : vector<1x16x1xf32>
    %40 = vector.broadcast %39 : vector<1x16x1xf32> to vector<2x16x32xf32>
    %41 = arith.mulf %36, %40 : vector<2x16x32xf32>
    %42 = vector.shape_cast %41 : vector<2x16x32xf32> to vector<32x32xf32>
    %43 = vector.extract_strided_slice %2 {offsets = [0, 0], sizes = [32, 4], strides = [1, 1]} : vector<80x4xf32> to vector<32x4xf32>
    %cst_21 = arith.constant dense<0.000000e+00> : vector<32x4xf32>
    %44 = tpu.matmul %42, %43, %cst_21 {dimension_numbers = #tpu.dot_dimension_numbers<[1], [0], [0], [1], [0, 0, 1, 1], [], []>} : vector<32x32xf32>, vector<32x4xf32>, vector<32x4xf32> -> vector<32x4xf32>
    %c0_22 = arith.constant 0 : index
    %c0_23 = arith.constant 0 : index
    %45 = vector.load %arg4[%c0_22, %c0_23] : memref<32x32xf32, #tpu.memory_space<vmem>>, vector<32x32xf32>
    %c0_24 = arith.constant 0 : index
    %c0_25 = arith.constant 0 : index
    %46 = vector.load %arg5[%c0_24, %c0_25] : memref<1x32xf32, #tpu.memory_space<vmem>>, vector<1x32xf32>
    "tpu.trace_start"() <{level = 10 : i32, message = "bij,bjd->bid"}> : () -> ()
    %cst_26 = arith.constant dense<0.000000e+00> : vector<2x16x32xf32>
    %47 = tpu.matmul %0, %41, %cst_26 {dimension_numbers = #tpu.dot_dimension_numbers<[2], [1], [1], [2], [0, 0, 0, 1, 1, 2], [0], [0]>} : vector<2x16x16xf32>, vector<2x16x32xf32>, vector<2x16x32xf32> -> vector<2x16x32xf32>
    "tpu.trace_stop"() : () -> ()
    %48 = vector.shape_cast %47 : vector<2x16x32xf32> to vector<32x32xf32>
    %cst_27 = arith.constant dense<0.000000e+00> : vector<32x32xf32>
    %49 = tpu.matmul %48, %45, %cst_27 {dimension_numbers = #tpu.dot_dimension_numbers<[1], [0], [0], [1], [0, 0, 1, 1], [], []>} : vector<32x32xf32>, vector<32x32xf32>, vector<32x32xf32> -> vector<32x32xf32>
    %50 = vector.shape_cast %49 : vector<32x32xf32> to vector<2x16x32xf32>
    %51 = vector.shape_cast %46 : vector<1x32xf32> to vector<1x1x32xf32>
    %52 = vector.broadcast %51 : vector<1x1x32xf32> to vector<2x16x32xf32>
    %53 = arith.addf %50, %52 : vector<2x16x32xf32>
    %54 = arith.mulf %53, %53 : vector<2x16x32xf32>
    %cst_28 = arith.constant dense<0.000000e+00> : vector<2x16xf32>
    %55 = vector.multi_reduction <add>, %54, %cst_28 [2] : vector<2x16x32xf32> to vector<2x16xf32>
    %56 = vector.shape_cast %55 : vector<2x16xf32> to vector<2x16x1xf32>
    %cst_29 = arith.constant 1.000000e-24 : f32
    %57 = vector.broadcast %cst_29 : f32 to vector<2x16x1xf32>
    %58 = arith.maximumf %56, %57 : vector<2x16x1xf32>
    %59 = math.rsqrt %58 : vector<2x16x1xf32>
    %60 = vector.broadcast %59 : vector<2x16x1xf32> to vector<2x16x32xf32>
    %61 = arith.mulf %53, %60 : vector<2x16x32xf32>
    %cst_30 = arith.constant 0.000000e+00 : f32
    %62 = vector.broadcast %cst_30 : f32 to vector<2x16x32xf32>
    %63 = arith.maximumf %61, %62 : vector<2x16x32xf32>
    %cst_31 = arith.constant dense<0.000000e+00> : vector<16xf32>
    %64 = vector.multi_reduction <add>, %63, %cst_31 [0, 2] : vector<2x16x32xf32> to vector<16xf32>
    %65 = vector.shape_cast %64 : vector<16xf32> to vector<1x16x1xf32>
    %66 = arith.mulf %63, %63 : vector<2x16x32xf32>
    %cst_32 = arith.constant dense<0.000000e+00> : vector<16xf32>
    %67 = vector.multi_reduction <add>, %66, %cst_32 [0, 2] : vector<2x16x32xf32> to vector<16xf32>
    %68 = vector.shape_cast %67 : vector<16xf32> to vector<1x16x1xf32>
    %cst_33 = arith.constant 1.562500e-02 : f32
    %69 = vector.broadcast %cst_33 : f32 to vector<1x16x1xf32>
    %70 = arith.mulf %65, %69 : vector<1x16x1xf32>
    %cst_34 = arith.constant 1.562500e-02 : f32
    %71 = vector.broadcast %cst_34 : f32 to vector<1x16x1xf32>
    %72 = arith.mulf %68, %71 : vector<1x16x1xf32>
    %73 = arith.mulf %70, %70 : vector<1x16x1xf32>
    %74 = arith.subf %72, %73 : vector<1x16x1xf32>
    %cst_35 = arith.constant 0.000000e+00 : f32
    %75 = vector.broadcast %cst_35 : f32 to vector<1x16x1xf32>
    %76 = arith.maximumf %74, %75 : vector<1x16x1xf32>
    %77 = vector.broadcast %70 : vector<1x16x1xf32> to vector<2x16x32xf32>
    %78 = arith.subf %63, %77 : vector<2x16x32xf32>
    %cst_36 = arith.constant 9.99999974E-6 : f32
    %79 = vector.broadcast %cst_36 : f32 to vector<1x16x1xf32>
    %80 = arith.addf %76, %79 : vector<1x16x1xf32>
    %81 = math.rsqrt %80 : vector<1x16x1xf32>
    %82 = vector.broadcast %81 : vector<1x16x1xf32> to vector<2x16x32xf32>
    %83 = arith.mulf %78, %82 : vector<2x16x32xf32>
    %84 = vector.shape_cast %83 : vector<2x16x32xf32> to vector<32x32xf32>
    %85 = vector.extract_strided_slice %2 {offsets = [32, 0], sizes = [32, 4], strides = [1, 1]} : vector<80x4xf32> to vector<32x4xf32>
    %cst_37 = arith.constant dense<0.000000e+00> : vector<32x4xf32>
    %86 = tpu.matmul %84, %85, %cst_37 {dimension_numbers = #tpu.dot_dimension_numbers<[1], [0], [0], [1], [0, 0, 1, 1], [], []>} : vector<32x32xf32>, vector<32x4xf32>, vector<32x4xf32> -> vector<32x4xf32>
    %87 = arith.addf %44, %86 : vector<32x4xf32>
    %c0_38 = arith.constant 0 : index
    %c0_39 = arith.constant 0 : index
    %88 = vector.load %arg6[%c0_38, %c0_39] : memref<32x16xf32, #tpu.memory_space<vmem>>, vector<32x16xf32>
    %c0_40 = arith.constant 0 : index
    %c0_41 = arith.constant 0 : index
    %89 = vector.load %arg7[%c0_40, %c0_41] : memref<1x16xf32, #tpu.memory_space<vmem>>, vector<1x16xf32>
    "tpu.trace_start"() <{level = 10 : i32, message = "bij,bjd->bid"}> : () -> ()
    %cst_42 = arith.constant dense<0.000000e+00> : vector<2x16x32xf32>
    %90 = tpu.matmul %0, %83, %cst_42 {dimension_numbers = #tpu.dot_dimension_numbers<[2], [1], [1], [2], [0, 0, 0, 1, 1, 2], [0], [0]>} : vector<2x16x16xf32>, vector<2x16x32xf32>, vector<2x16x32xf32> -> vector<2x16x32xf32>
    "tpu.trace_stop"() : () -> ()
    %91 = vector.shape_cast %90 : vector<2x16x32xf32> to vector<32x32xf32>
    %cst_43 = arith.constant dense<0.000000e+00> : vector<32x16xf32>
    %92 = tpu.matmul %91, %88, %cst_43 {dimension_numbers = #tpu.dot_dimension_numbers<[1], [0], [0], [1], [0, 0, 1, 1], [], []>} : vector<32x32xf32>, vector<32x16xf32>, vector<32x16xf32> -> vector<32x16xf32>
    %93 = vector.shape_cast %92 : vector<32x16xf32> to vector<2x16x16xf32>
    %94 = vector.shape_cast %89 : vector<1x16xf32> to vector<1x1x16xf32>
    %95 = vector.broadcast %94 : vector<1x1x16xf32> to vector<2x16x16xf32>
    %96 = arith.addf %93, %95 : vector<2x16x16xf32>
    %97 = arith.mulf %96, %96 : vector<2x16x16xf32>
    %cst_44 = arith.constant dense<0.000000e+00> : vector<2x16xf32>
    %98 = vector.multi_reduction <add>, %97, %cst_44 [2] : vector<2x16x16xf32> to vector<2x16xf32>
    %99 = vector.shape_cast %98 : vector<2x16xf32> to vector<2x16x1xf32>
    %cst_45 = arith.constant 1.000000e-24 : f32
    %100 = vector.broadcast %cst_45 : f32 to vector<2x16x1xf32>
    %101 = arith.maximumf %99, %100 : vector<2x16x1xf32>
    %102 = math.rsqrt %101 : vector<2x16x1xf32>
    %103 = vector.broadcast %102 : vector<2x16x1xf32> to vector<2x16x16xf32>
    %104 = arith.mulf %96, %103 : vector<2x16x16xf32>
    %105 = vector.shape_cast %104 : vector<2x16x16xf32> to vector<32x16xf32>
    %106 = vector.extract_strided_slice %2 {offsets = [64, 0], sizes = [16, 4], strides = [1, 1]} : vector<80x4xf32> to vector<16x4xf32>
    %cst_46 = arith.constant dense<0.000000e+00> : vector<32x4xf32>
    %107 = tpu.matmul %105, %106, %cst_46 {dimension_numbers = #tpu.dot_dimension_numbers<[1], [0], [0], [1], [0, 0, 1, 1], [], []>} : vector<32x16xf32>, vector<16x4xf32>, vector<32x4xf32> -> vector<32x4xf32>
    %108 = arith.addf %87, %107 : vector<32x4xf32>
    %c0_47 = arith.constant 0 : index
    %c0_48 = arith.constant 0 : index
    %109 = vector.load %arg9[%c0_47, %c0_48] : memref<1x4xf32, #tpu.memory_space<vmem>>, vector<1x4xf32>
    %110 = vector.broadcast %109 : vector<1x4xf32> to vector<32x4xf32>
    %111 = arith.addf %108, %110 : vector<32x4xf32>
    %112 = tpu.transpose %111, [1, 0] : vector<32x4xf32> -> vector<4x32xf32>
    %c0_49 = arith.constant 0 : index
    %c0_50 = arith.constant 0 : index
    %113 = vector.load %arg10[%c0_49, %c0_50] : memref<4x32xf32, #tpu.memory_space<vmem>>, vector<4x32xf32>
    tpu.vector_store %arg10[%c0_49, %c0_50], %112 {strides = array<i32>} : memref<4x32xf32, #tpu.memory_space<vmem>>, vector<4x32xf32>,
    return
  }
}

</mosaic_0001>

<llo_original>
// kernel: tpu_custom_call.1
$region0: #{tpu_custom_call.1}
  #allocation0 [shape = 'u32[]', space=smem, size = 0x4, offset = 0x4, fixed_abs, tag = 'smem constant byte address 0x4 - core index']
  #allocation1 [shape = 'u32[144,128]{1,0:T(1,128)}', space=vmem, size = 0x12000, scoped, tag = 'internal scratch']
  %s0 = inlined_call_operand.vmem [shape: f32[2,16,8], index: 0, kind: input, shape index: {}]
  %s1 = inlined_call_operand.vmem [shape: f32[2,16,16], index: 1, kind: input, shape index: {}]
  %s2 = inlined_call_operand.vmem [shape: f32[8,32], index: 2, kind: input, shape index: {}]
  %s3 = inlined_call_operand.vmem [shape: f32[1,32], index: 3, kind: input, shape index: {}]
  %s4 = inlined_call_operand.vmem [shape: f32[32,32], index: 4, kind: input, shape index: {}]
  %s5 = inlined_call_operand.vmem [shape: f32[1,32], index: 5, kind: input, shape index: {}]
  %s6 = inlined_call_operand.vmem [shape: f32[32,16], index: 6, kind: input, shape index: {}]
  %s7 = inlined_call_operand.vmem [shape: f32[1,16], index: 7, kind: input, shape index: {}]
  %s8 = inlined_call_operand.vmem [shape: f32[80,4], index: 8, kind: input, shape index: {}]
  %s9 = inlined_call_operand.vmem [shape: f32[1,4], index: 9, kind: input, shape index: {}]
  %s10 = inlined_call_operand.hbm [shape: f32[4,32], index: 10, kind: output, shape index: {}]
  %s11 = sld [smem:[#allocation0]]
  $region50: #{tpu_custom_call.1} parent=0
    _
  %s13 = ssub.s32 1, %s11
  %s14 = scalar_select 0, %s13, %s11
  $region1: #{tpu_custom_call.1} parent=0
    #allocation2 [shape = 'u8[2048]{0}', space=vmem, size = 0x800, scoped, tag = 'output window, operand 0, single buffered']
    #allocation3 [shape = 's32[1]{0}', space=sflag, size = 0x4, scoped, tag = 'scoped memory for tpu_custom_call.1']
    %15 = vsyncpa [#allocation3], 0
    // Predicated region
    $region2: #{tpu_custom_call.1} parent=1 // pred_check
      _
    $region3: #{tpu_custom_call.1} parent=1 // pred_check_branch
      %17 = sbr.rel (0) target = $region5
    $region4: #{tpu_custom_call.1} parent=1 // pred_region
      _
    $region5: #{tpu_custom_call.1} parent=1 // pred_fallthru
      _
    // Predicated region
    $region6: #{tpu_custom_call.1} parent=1 // pred_check
      _
    $region7: #{tpu_custom_call.1} parent=1 // pred_check_branch
      %19 = sbr.rel (0) target = $region9
    $region8: #{tpu_custom_call.1} parent=1 // pred_region
      _
    $region9: #{tpu_custom_call.1} parent=1 // pred_fallthru
      _
    // Predicated region
    $region10: #{tpu_custom_call.1} parent=1 // pred_check
      _
    $region11: #{tpu_custom_call.1} parent=1 // pred_check_branch
      %21 = sbr.rel (0) target = $region13
    $region12: #{tpu_custom_call.1} parent=1 // pred_region
      _
    $region13: #{tpu_custom_call.1} parent=1 // pred_fallthru
      _
    // Predicated region
    $region14: #{tpu_custom_call.1} parent=1 // pred_check
      _
    $region15: #{tpu_custom_call.1} parent=1 // pred_check_branch
      %23 = sbr.rel (0) target = $region17
    $region16: #{tpu_custom_call.1} parent=1 // pred_region
      _
    $region17: #{tpu_custom_call.1} parent=1 // pred_fallthru
      _
    // Predicated region
    $region18: #{tpu_custom_call.1} parent=1 // pred_check
      _
    $region19: #{tpu_custom_call.1} parent=1 // pred_check_branch
      %25 = sbr.rel (0) target = $region21
    $region20: #{tpu_custom_call.1} parent=1 // pred_region
      _
    $region21: #{tpu_custom_call.1} parent=1 // pred_fallthru
      _
    // Predicated region
    $region22: #{tpu_custom_call.1} parent=1 // pred_check
      _
    $region23: #{tpu_custom_call.1} parent=1 // pred_check_branch
      %27 = sbr.rel (0) target = $region25
    $region24: #{tpu_custom_call.1} parent=1 // pred_region
      _
    $region25: #{tpu_custom_call.1} parent=1 // pred_fallthru
      _
    // Predicated region
    $region26: #{tpu_custom_call.1} parent=1 // pred_check
      _
    $region27: #{tpu_custom_call.1} parent=1 // pred_check_branch
      %29 = sbr.rel (0) target = $region29
    $region28: #{tpu_custom_call.1} parent=1 // pred_region
      _
    $region29: #{tpu_custom_call.1} parent=1 // pred_fallthru
      _
    // Predicated region
    $region30: #{tpu_custom_call.1} parent=1 // pred_check
      _
    $region31: #{tpu_custom_call.1} parent=1 // pred_check_branch
      %31 = sbr.rel (0) target = $region33
    $region32: #{tpu_custom_call.1} parent=1 // pred_region
      _
    $region33: #{tpu_custom_call.1} parent=1 // pred_fallthru
      _
    // Predicated region
    $region34: #{tpu_custom_call.1} parent=1 // pred_check
      _
    $region35: #{tpu_custom_call.1} parent=1 // pred_check_branch
      %33 = sbr.rel (0) target = $region37
    $region36: #{tpu_custom_call.1} parent=1 // pred_region
      _
    $region37: #{tpu_custom_call.1} parent=1 // pred_fallthru
      _
    // Predicated region
    $region38: #{tpu_custom_call.1} parent=1 // pred_check
      _
    $region39: #{tpu_custom_call.1} parent=1 // pred_check_branch
      %35 = sbr.rel (0) target = $region41
    $region40: #{tpu_custom_call.1} parent=1 // pred_region
      _
    $region41: #{tpu_custom_call.1} parent=1 // pred_fallthru
      _
    %v36 = vld [vmem:[%s1] sm:$0xff]
    %v37 = vld [vmem:[%s1 + $0x8] sm:$0xff]
    %v38 = vld [vmem:[%s1 + $0x10] sm:$0xff]
    %v39 = vld [vmem:[%s1 + $0x18] sm:$0xff]
    %v40 = vld [vmem:[%s0] sm:$0xff]
    %v41 = vld [vmem:[%s0 + $0x8] sm:$0xff]
    %v42 = vld [vmem:[%s0 + $0x10] sm:$0xff]
    %v43 = vld [vmem:[%s0 + $0x18] sm:$0xff]
    %v44 = vld [vmem:[%s8] sm:$0xff]
    %v45 = vld [vmem:[%s8 + $0x8] sm:$0xff]
    %v46 = vld [vmem:[%s8 + $0x10] sm:$0xff]
    %v47 = vld [vmem:[%s8 + $0x18] sm:$0xff]
    %v48 = vld [vmem:[%s8 + $0x20] sm:$0xff]
    %v49 = vld [vmem:[%s8 + $0x28] sm:$0xff]
    %v50 = vld [vmem:[%s8 + $0x30] sm:$0xff]
    %v51 = vld [vmem:[%s8 + $0x38] sm:$0xff]
    %v52 = vld [vmem:[%s8 + $0x40] sm:$0xff]
    %v53 = vld [vmem:[%s8 + $0x48] sm:$0xff]
    %v54 = vld [vmem:[%s2] sm:$0xff]
    %v55 = vld [vmem:[%s3] sm:$0x1]
    %vm56 = vcmask 130048
    %v58 = vsel %vm56, %v36, 0
    %v61 = vsel %vm56, %v37, 0
    %63 = vmatprep.subr.mxu0 0.0
    %64 = vmatpush1.msra.mxu0 0.0
    %65 = vmatprep.subr.mxu0 0.0
    %66 = vmatpush1.msra.mxu0 0.0
    %67 = vmatprep.subr.mxu0 0.0
    %68 = vmatpush1.msra.mxu0 0.0
    %69 = vmatprep.subr.mxu0 0.0
    %70 = vmatpush1.msra.mxu0 0.0
    %71 = vmatprep.subr.mxu0 0.0
    %72 = vmatpush1.msra.mxu0 0.0
    %73 = vmatprep.subr.mxu0 0.0
    %74 = vmatpush1.msra.mxu0 0.0
    %75 = vmatprep.subr.mxu0 0.0
    %76 = vmatpush1.msra.mxu0 0.0
    %77 = vmatprep.subr.mxu0 0.0
    %78 = vmatpush1.msra.mxu0 0.0
    %79 = vmatprep.subr.mxu0 0.0
    %80 = vmatpush1.msra.mxu0 0.0
    %81 = vmatprep.subr.mxu0 0.0
    %82 = vmatpush1.msra.mxu0 0.0
    %83 = vmatprep.subr.mxu0 0.0
    %84 = vmatpush1.msra.mxu0 0.0
    %85 = vmatprep.subr.mxu0 0.0
    %86 = vmatpush1.msra.mxu0 0.0
    %87 = vmatprep.subr.mxu0 0.0
    %88 = vmatpush1.msra.mxu0 0.0
    %89 = vmatprep.subr.mxu0 0.0
    %90 = vmatpush1.msra.mxu0 0.0
    %91 = vmatprep.subr.mxu0 0.0
    %92 = vmatpush1.msra.mxu0 %v41
    %93 = vmatprep.subr.mxu0 0.0
    %94 = vmatpush1.msra.mxu0 %v40
    %95 = vmatprep.subr.mxu0 0.0
    %96 = vmatpush2.msra.mxu0 0.0
    %97 = vmatprep.subr.mxu0 0.0
    %98 = vmatpush2.msra.mxu0 0.0
    %99 = vmatprep.subr.mxu0 0.0
    %100 = vmatpush2.msra.mxu0 0.0
    %101 = vmatprep.subr.mxu0 0.0
    %102 = vmatpush2.msra.mxu0 0.0
    %103 = vmatprep.subr.mxu0 0.0
    %104 = vmatpush2.msra.mxu0 0.0
    %105 = vmatprep.subr.mxu0 0.0
    %106 = vmatpush2.msra.mxu0 0.0
    %107 = vmatprep.subr.mxu0 0.0
    %108 = vmatpush2.msra.mxu0 0.0
    %109 = vmatprep.subr.mxu0 0.0
    %110 = vmatpush2.msra.mxu0 0.0
    %111 = vmatprep.subr.mxu0 0.0
    %112 = vmatpush2.msra.mxu0 0.0
    %113 = vmatprep.subr.mxu0 0.0
    %114 = vmatpush2.msra.mxu0 0.0
    %115 = vmatprep.subr.mxu0 0.0
    %116 = vmatpush2.msra.mxu0 0.0
    %117 = vmatprep.subr.mxu0 0.0
    %118 = vmatpush2.msra.mxu0 0.0
    %119 = vmatprep.subr.mxu0 0.0
    %120 = vmatpush2.msra.mxu0 0.0
    %121 = vmatprep.subr.mxu0 0.0
    %122 = vmatpush2.msra.mxu0 0.0
    %123 = vmatprep.subr.mxu0 0.0
    %124 = vmatpush2.msra.mxu0 0.0
    %125 = vmatprep.subr.mxu0 0.0
    %126 = vmatpush2.msra.mxu0 0.0
    %127 = vmatprep.mubr.f32.mxu0 0.0
    %128 = vmatmul.mubr.f32.gmra.mxu0 %v58
    %v129 = vpop.f32.mrf.mxu0
    %v130 = vadd.f32 0.0, %v129
    %v131 = vpop.f32.mrf.mxu0
    %132 = vmatprep.mubr.f32.mxu0 0.0
    %133 = vmatmul.mubr.f32.gmra.mxu0 %v61
    %v134 = vpop.f32.mrf.mxu0
    %v135 = vadd.f32 0.0, %v134
    %v136 = vpop.f32.mrf.mxu0
    %137 = vdwg.mxu0
    %v139 = vsel %vm56, %v38, 0
    %v142 = vsel %vm56, %v39, 0
    %144 = vmatprep.subr.mxu0 0.0
    %145 = vmatpush1.msra.mxu0 0.0
    %146 = vmatprep.subr.mxu0 0.0
    %147 = vmatpush1.msra.mxu0 0.0
    %148 = vmatprep.subr.mxu0 0.0
    %149 = vmatpush1.msra.mxu0 0.0
    %150 = vmatprep.subr.mxu0 0.0
    %151 = vmatpush1.msra.mxu0 0.0
    %152 = vmatprep.subr.mxu0 0.0
    %153 = vmatpush1.msra.mxu0 0.0
    %154 = vmatprep.subr.mxu0 0.0
    %155 = vmatpush1.msra.mxu0 0.0
    %156 = vmatprep.subr.mxu0 0.0
    %157 = vmatpush1.msra.mxu0 0.0
    %158 = vmatprep.subr.mxu0 0.0
    %159 = vmatpush1.msra.mxu0 0.0
    %160 = vmatprep.subr.mxu0 0.0
    %161 = vmatpush1.msra.mxu0 0.0
    %162 = vmatprep.subr.mxu0 0.0
    %163 = vmatpush1.msra.mxu0 0.0
    %164 = vmatprep.subr.mxu0 0.0
    %165 = vmatpush1.msra.mxu0 0.0
    %166 = vmatprep.subr.mxu0 0.0
    %167 = vmatpush1.msra.mxu0 0.0
    %168 = vmatprep.subr.mxu0 0.0
    %169 = vmatpush1.msra.mxu0 0.0
    %170 = vmatprep.subr.mxu0 0.0
    %171 = vmatpush1.msra.mxu0 0.0
    %172 = vmatprep.subr.mxu0 0.0
    %173 = vmatpush1.msra.mxu0 %v43
    %174 = vmatprep.subr.mxu0 0.0
    %175 = vmatpush1.msra.mxu0 %v42
    %176 = vmatprep.subr.mxu0 0.0
    %177 = vmatpush2.msra.mxu0 0.0
    %178 = vmatprep.subr.mxu0 0.0
    %179 = vmatpush2.msra.mxu0 0.0
    %180 = vmatprep.subr.mxu0 0.0
    %181 = vmatpush2.msra.mxu0 0.0
    %182 = vmatprep.subr.mxu0 0.0
    %183 = vmatpush2.msra.mxu0 0.0
    %184 = vmatprep.subr.mxu0 0.0
    %185 = vmatpush2.msra.mxu0 0.0
    %186 = vmatprep.subr.mxu0 0.0
    %187 = vmatpush2.msra.mxu0 0.0
    %188 = vmatprep.subr.mxu0 0.0
    %189 = vmatpush2.msra.mxu0 0.0
    %190 = vmatprep.subr.mxu0 0.0
    %191 = vmatpush2.msra.mxu0 0.0
    %192 = vmatprep.subr.mxu0 0.0
    %193 = vmatpush2.msra.mxu0 0.0
    %194 = vmatprep.subr.mxu0 0.0
    %195 = vmatpush2.msra.mxu0 0.0
    %196 = vmatprep.subr.mxu0 0.0
    %197 = vmatpush2.msra.mxu0 0.0
    %198 = vmatprep.subr.mxu0 0.0
    %199 = vmatpush2.msra.mxu0 0.0
    %200 = vmatprep.subr.mxu0 0.0
    %201 = vmatpush2.msra.mxu0 0.0
    %202 = vmatprep.subr.mxu0 0.0
    %203 = vmatpush2.msra.mxu0 0.0
    %204 = vmatprep.subr.mxu0 0.0
    %205 = vmatpush2.msra.mxu0 0.0
    %206 = vmatprep.subr.mxu0 0.0
    %207 = vmatpush2.msra.mxu0 0.0
    %208 = vmatprep.mubr.f32.mxu0 0.0
    %209 = vmatmul.mubr.f32.gmra.mxu0 %v139
    %v210 = vpop.f32.mrf.mxu0
    %v211 = vadd.f32 0.0, %v210
    %v212 = vpop.f32.mrf.mxu0
    %213 = vmatprep.mubr.f32.mxu0 0.0
    %214 = vmatmul.mubr.f32.gmra.mxu0 %v142
    %v215 = vpop.f32.mrf.mxu0
    %v216 = vadd.f32 0.0, %v215
    %v217 = vpop.f32.mrf.mxu0
    %218 = vdwg.mxu0
    %vm219 = vcmask 64512
    %v221 = vsel %vm219, %v130, 0
    %v224 = vsel %vm219, %v135, 0
    %v227 = vsel %vm219, %v211, 0
    %v230 = vsel %vm219, %v216, 0
    %232 = vmatprep.subr.mxu0 0.0
    %233 = vmatpush1.msra.mxu0 0.0
    %234 = vmatprep.subr.mxu0 0.0
    %235 = vmatpush1.msra.mxu0 0.0
    %236 = vmatprep.subr.mxu0 0.0
    %237 = vmatpush1.msra.mxu0 0.0
    %238 = vmatprep.subr.mxu0 0.0
    %239 = vmatpush1.msra.mxu0 0.0
    %240 = vmatprep.subr.mxu0 0.0
    %241 = vmatpush1.msra.mxu0 0.0
    %242 = vmatprep.subr.mxu0 0.0
    %243 = vmatpush1.msra.mxu0 0.0
    %244 = vmatprep.subr.mxu0 0.0
    %245 = vmatpush1.msra.mxu0 0.0
    %246 = vmatprep.subr.mxu0 0.0
    %247 = vmatpush1.msra.mxu0 0.0
    %248 = vmatprep.subr.mxu0 0.0
    %249 = vmatpush1.msra.mxu0 0.0
    %250 = vmatprep.subr.mxu0 0.0
    %251 = vmatpush1.msra.mxu0 0.0
    %252 = vmatprep.subr.mxu0 0.0
    %253 = vmatpush1.msra.mxu0 0.0
    %254 = vmatprep.subr.mxu0 0.0
    %255 = vmatpush1.msra.mxu0 0.0
    %256 = vmatprep.subr.mxu0 0.0
    %257 = vmatpush1.msra.mxu0 0.0
    %258 = vmatprep.subr.mxu0 0.0
    %259 = vmatpush1.msra.mxu0 0.0
    %260 = vmatprep.subr.mxu0 0.0
    %261 = vmatpush1.msra.mxu0 0.0
    %262 = vmatprep.subr.mxu0 0.0
    %263 = vmatpush1.msra.mxu0 %v54
    %264 = vmatprep.subr.mxu0 0.0
    %265 = vmatpush2.msra.mxu0 0.0
    %266 = vmatprep.subr.mxu0 0.0
    %267 = vmatpush2.msra.mxu0 0.0
    %268 = vmatprep.subr.mxu0 0.0
    %269 = vmatpush2.msra.mxu0 0.0
    %270 = vmatprep.subr.mxu0 0.0
    %271 = vmatpush2.msra.mxu0 0.0
    %272 = vmatprep.subr.mxu0 0.0
    %273 = vmatpush2.msra.mxu0 0.0
    %274 = vmatprep.subr.mxu0 0.0
    %275 = vmatpush2.msra.mxu0 0.0
    %276 = vmatprep.subr.mxu0 0.0
    %277 = vmatpush2.msra.mxu0 0.0
    %278 = vmatprep.subr.mxu0 0.0
    %279 = vmatpush2.msra.mxu0 0.0
    %280 = vmatprep.subr.mxu0 0.0
    %281 = vmatpush2.msra.mxu0 0.0
    %282 = vmatprep.subr.mxu0 0.0
    %283 = vmatpush2.msra.mxu0 0.0
    %284 = vmatprep.subr.mxu0 0.0
    %285 = vmatpush2.msra.mxu0 0.0
    %286 = vmatprep.subr.mxu0 0.0
    %287 = vmatpush2.msra.mxu0 0.0
    %288 = vmatprep.subr.mxu0 0.0
    %289 = vmatpush2.msra.mxu0 0.0
    %290 = vmatprep.subr.mxu0 0.0
    %291 = vmatpush2.msra.mxu0 0.0
    %292 = vmatprep.subr.mxu0 0.0
    %293 = vmatpush2.msra.mxu0 0.0
    %294 = vmatprep.subr.mxu0 0.0
    %295 = vmatpush2.msra.mxu0 0.0
    %296 = vmatprep.mubr.f32.mxu0 0.0
    %297 = vmatmul.mubr.f32.gmra.mxu0 %v221
    %v298 = vpop.f32.mrf.mxu0
    %v299 = vadd.f32 0.0, %v298
    %v300 = vpop.f32.mrf.mxu0
    %301 = vmatprep.mubr.f32.mxu0 0.0
    %302 = vmatmul.mubr.f32.gmra.mxu0 %v224
    %v303 = vpop.f32.mrf.mxu0
    %v304 = vadd.f32 0.0, %v303
    %v305 = vpop.f32.mrf.mxu0
    %306 = vmatprep.mubr.f32.mxu0 0.0
    %307 = vmatmul.mubr.f32.gmra.mxu0 %v227
    %v308 = vpop.f32.mrf.mxu0
    %v309 = vadd.f32 0.0, %v308
    %v310 = vpop.f32.mrf.mxu0
    %311 = vmatprep.mubr.f32.mxu0 0.0
    %312 = vmatmul.mubr.f32.gmra.mxu0 %v230
    %v313 = vpop.f32.mrf.mxu0
    %v314 = vadd.f32 0.0, %v313
    %v315 = vpop.f32.mrf.mxu0
    %316 = vdwg.mxu0
    %v318 = vlaneseq
    %v319 = vshrl.u32 %v318, 7
    %v320 = vsub.s32 0, %v319
    %v321 = vrot.slane %v55, %v320
    %v323 = vadd.f32 %v299, %v321
    %v324 = vadd.f32 %v304, %v321
    %v325 = vadd.f32 %v309, %v321
    %v326 = vadd.f32 %v314, %v321
    %v327 = vmul.f32 %v323, %v323
    %v328 = vmul.f32 %v324, %v324
    %v329 = vmul.f32 %v325, %v325
    %v330 = vmul.f32 %v326, %v326
    %vm331 = vcmask 261120
    %v332 = vsel %vm331, %v327, 0.0
    %333 = vadd.xlane.f32.xlu0 %v332
    %v334 = vpop.xlane.xlu0 %333
    %v335 = vsel %vm331, %v328, 0.0
    %336 = vadd.xlane.f32.xlu0 %v335
    %v337 = vpop.xlane.xlu0 %336
    %v338 = vsel %vm331, %v329, 0.0
    %339 = vadd.xlane.f32.xlu0 %v338
    %v340 = vpop.xlane.xlu0 %339
    %v341 = vsel %vm331, %v330, 0.0
    %342 = vadd.xlane.f32.xlu0 %v341
    %v343 = vpop.xlane.xlu0 %342
    %v344 = vmax.f32 %v334, 1e-24
    %v345 = vmax.f32 %v337, 1e-24
    %v346 = vmax.f32 %v340, 1e-24
    %v347 = vmax.f32 %v343, 1e-24
    %v348 = vrsqrt.pop %v344
    %v349 = vrsqrt.pop %v345
    %v350 = vrsqrt.pop %v346
    %v351 = vrsqrt.pop %v347
    %v352 = vmul.f32 %v323, %v348
    %v353 = vmul.f32 %v324, %v349
    %v354 = vmul.f32 %v325, %v350
    %v355 = vmul.f32 %v326, %v351
    %v356 = vmax.f32 %v352, 0.0
    %v357 = vmax.f32 %v353, 0.0
    %v358 = vmax.f32 %v354, 0.0
    %v359 = vmax.f32 %v355, 0.0
    %v360 = vsel %vm331, %v356, 0.0
    %v361 = vsel %vm331, %v358, 0.0
    %v362 = vadd.f32 %v360, %v361
    %363 = vadd.xlane.f32.xlu0 %v362
    %v364 = vpop.xlane.xlu0 %363
    %v365 = vsel %vm331, %v357, 0.0
    %v366 = vsel %vm331, %v359, 0.0
    %v367 = vadd.f32 %v365, %v366
    %368 = vadd.xlane.f32.xlu0 %v367
    %v369 = vpop.xlane.xlu0 %368
    %v370 = vmul.f32 %v356, %v356
    %v371 = vmul.f32 %v357, %v357
    %v372 = vmul.f32 %v358, %v358
    %v373 = vmul.f32 %v359, %v359
    %v374 = vsel %vm331, %v370, 0.0
    %v375 = vsel %vm331, %v372, 0.0
    %v376 = vadd.f32 %v374, %v375
    %377 = vadd.xlane.f32.xlu0 %v376
    %v378 = vpop.xlane.xlu0 %377
    %v379 = vsel %vm331, %v371, 0.0
    %v380 = vsel %vm331, %v373, 0.0
    %v381 = vadd.f32 %v379, %v380
    %382 = vadd.xlane.f32.xlu0 %v381
    %v383 = vpop.xlane.xlu0 %382
    %v384 = vmul.f32 %v364, 0.015625
    %v385 = vmul.f32 %v369, 0.015625
    %v386 = vmul.f32 %v378, 0.015625
    %v387 = vmul.f32 %v383, 0.015625
    %v388 = vmul.f32 %v384, %v384
    %v389 = vmul.f32 %v385, %v385
    %v390 = vsub.f32 %v386, %v388
    %v391 = vsub.f32 %v387, %v389
    %v392 = vmax.f32 %v390, 0.0
    %v393 = vmax.f32 %v391, 0.0
    %v394 = vsub.f32 %v356, %v384
    %v395 = vsub.f32 %v357, %v385
    %v396 = vsub.f32 %v358, %v384
    %v397 = vsub.f32 %v359, %v385
    %v398 = vadd.f32 %v392, 1e-05
    %v399 = vadd.f32 %v393, 1e-05
    %v400 = vrsqrt.pop %v398
    %v401 = vrsqrt.pop %v399
    %v402 = vmul.f32 %v394, %v400
    %v403 = vmul.f32 %v395, %v401
    %v404 = vmul.f32 %v396, %v400
    %v405 = vmul.f32 %v397, %v401
    %v406 = vld [vmem:[%s4] sm:$0xff]
    %v407 = vld [vmem:[%s4 + $0x8] sm:$0xff]
    %v408 = vld [vmem:[%s4 + $0x10] sm:$0xff]
    %v409 = vld [vmem:[%s4 + $0x18] sm:$0xff]
    %v410 = vld [vmem:[%s5] sm:$0x1]
    %411 = vmatprep.subr.mxu0 0.0
    %412 = vmatpush1.msra.mxu0 0.0
    %413 = vmatprep.subr.mxu0 0.0
    %414 = vmatpush1.msra.mxu0 0.0
    %415 = vmatprep.subr.mxu0 0.0
    %416 = vmatpush1.msra.mxu0 0.0
    %417 = vmatprep.subr.mxu0 0.0
    %418 = vmatpush1.msra.mxu0 0.0
    %419 = vmatprep.subr.mxu0 0.0
    %420 = vmatpush1.msra.mxu0 0.0
    %421 = vmatprep.subr.mxu0 0.0
    %422 = vmatpush1.msra.mxu0 0.0
    %423 = vmatprep.subr.mxu0 0.0
    %424 = vmatpush1.msra.mxu0 0.0
    %425 = vmatprep.subr.mxu0 0.0
    %426 = vmatpush1.msra.mxu0 0.0
    %427 = vmatprep.subr.mxu0 0.0
    %428 = vmatpush1.msra.mxu0 0.0
    %429 = vmatprep.subr.mxu0 0.0
    %430 = vmatpush1.msra.mxu0 0.0
    %431 = vmatprep.subr.mxu0 0.0
    %432 = vmatpush1.msra.mxu0 0.0
    %433 = vmatprep.subr.mxu0 0.0
    %434 = vmatpush1.msra.mxu0 0.0
    %435 = vmatprep.subr.mxu0 0.0
    %436 = vmatpush1.msra.mxu0 0.0
    %437 = vmatprep.subr.mxu0 0.0
    %438 = vmatpush1.msra.mxu0 0.0
    %439 = vmatprep.subr.mxu0 0.0
    %440 = vmatpush1.msra.mxu0 %v403
    %441 = vmatprep.subr.mxu0 0.0
    %442 = vmatpush1.msra.mxu0 %v402
    %443 = vmatprep.subr.mxu0 0.0
    %444 = vmatpush2.msra.mxu0 0.0
    %445 = vmatprep.subr.mxu0 0.0
    %446 = vmatpush2.msra.mxu0 0.0
    %447 = vmatprep.subr.mxu0 0.0
    %448 = vmatpush2.msra.mxu0 0.0
    %449 = vmatprep.subr.mxu0 0.0
    %450 = vmatpush2.msra.mxu0 0.0
    %451 = vmatprep.subr.mxu0 0.0
    %452 = vmatpush2.msra.mxu0 0.0
    %453 = vmatprep.subr.mxu0 0.0
    %454 = vmatpush2.msra.mxu0 0.0
    %455 = vmatprep.subr.mxu0 0.0
    %456 = vmatpush2.msra.mxu0 0.0
    %457 = vmatprep.subr.mxu0 0.0
    %458 = vmatpush2.msra.mxu0 0.0
    %459 = vmatprep.subr.mxu0 0.0
    %460 = vmatpush2.msra.mxu0 0.0
    %461 = vmatprep.subr.mxu0 0.0
    %462 = vmatpush2.msra.mxu0 0.0
    %463 = vmatprep.subr.mxu0 0.0
    %464 = vmatpush2.msra.mxu0 0.0
    %465 = vmatprep.subr.mxu0 0.0
    %466 = vmatpush2.msra.mxu0 0.0
    %467 = vmatprep.subr.mxu0 0.0
    %468 = vmatpush2.msra.mxu0 0.0
    %469 = vmatprep.subr.mxu0 0.0
    %470 = vmatpush2.msra.mxu0 0.0
    %471 = vmatprep.subr.mxu0 0.0
    %472 = vmatpush2.msra.mxu0 0.0
    %473 = vmatprep.subr.mxu0 0.0
    %474 = vmatpush2.msra.mxu0 0.0
    %475 = vmatprep.mubr.f32.mxu0 0.0
    %476 = vmatmul.mubr.f32.gmra.mxu0 %v58
    %v477 = vpop.f32.mrf.mxu0
    %v478 = vadd.f32 0.0, %v477
    %v479 = vpop.f32.mrf.mxu0
    %480 = vmatprep.mubr.f32.mxu0 0.0
    %481 = vmatmul.mubr.f32.gmra.mxu0 %v61
    %v482 = vpop.f32.mrf.mxu0
    %v483 = vadd.f32 0.0, %v482
    %v484 = vpop.f32.mrf.mxu0
    %485 = vdwg.mxu0
    %486 = vmatprep.subr.mxu0 0.0
    %487 = vmatpush1.msra.mxu0 0.0
    %488 = vmatprep.subr.mxu0 0.0
    %489 = vmatpush1.msra.mxu0 0.0
    %490 = vmatprep.subr.mxu0 0.0
    %491 = vmatpush1.msra.mxu0 0.0
    %492 = vmatprep.subr.mxu0 0.0
    %493 = vmatpush1.msra.mxu0 0.0
    %494 = vmatprep.subr.mxu0 0.0
    %495 = vmatpush1.msra.mxu0 0.0
    %496 = vmatprep.subr.mxu0 0.0
    %497 = vmatpush1.msra.mxu0 0.0
    %498 = vmatprep.subr.mxu0 0.0
    %499 = vmatpush1.msra.mxu0 0.0
    %500 = vmatprep.subr.mxu0 0.0
    %501 = vmatpush1.msra.mxu0 0.0
    %502 = vmatprep.subr.mxu0 0.0
    %503 = vmatpush1.msra.mxu0 0.0
    %504 = vmatprep.subr.mxu0 0.0
    %505 = vmatpush1.msra.mxu0 0.0
    %506 = vmatprep.subr.mxu0 0.0
    %507 = vmatpush1.msra.mxu0 0.0
    %508 = vmatprep.subr.mxu0 0.0
    %509 = vmatpush1.msra.mxu0 0.0
    %510 = vmatprep.subr.mxu0 0.0
    %511 = vmatpush1.msra.mxu0 0.0
    %512 = vmatprep.subr.mxu0 0.0
    %513 = vmatpush1.msra.mxu0 0.0
    %514 = vmatprep.subr.mxu0 0.0
    %515 = vmatpush1.msra.mxu0 %v405
    %516 = vmatprep.subr.mxu0 0.0
    %517 = vmatpush1.msra.mxu0 %v404
    %518 = vmatprep.subr.mxu0 0.0
    %519 = vmatpush2.msra.mxu0 0.0
    %520 = vmatprep.subr.mxu0 0.0
    %521 = vmatpush2.msra.mxu0 0.0
    %522 = vmatprep.subr.mxu0 0.0
    %523 = vmatpush2.msra.mxu0 0.0
    %524 = vmatprep.subr.mxu0 0.0
    %525 = vmatpush2.msra.mxu0 0.0
    %526 = vmatprep.subr.mxu0 0.0
    %527 = vmatpush2.msra.mxu0 0.0
    %528 = vmatprep.subr.mxu0 0.0
    %529 = vmatpush2.msra.mxu0 0.0
    %530 = vmatprep.subr.mxu0 0.0
    %531 = vmatpush2.msra.mxu0 0.0
    %532 = vmatprep.subr.mxu0 0.0
    %533 = vmatpush2.msra.mxu0 0.0
    %534 = vmatprep.subr.mxu0 0.0
    %535 = vmatpush2.msra.mxu0 0.0
    %536 = vmatprep.subr.mxu0 0.0
    %537 = vmatpush2.msra.mxu0 0.0
    %538 = vmatprep.subr.mxu0 0.0
    %539 = vmatpush2.msra.mxu0 0.0
    %540 = vmatprep.subr.mxu0 0.0
    %541 = vmatpush2.msra.mxu0 0.0
    %542 = vmatprep.subr.mxu0 0.0
    %543 = vmatpush2.msra.mxu0 0.0
    %544 = vmatprep.subr.mxu0 0.0
    %545 = vmatpush2.msra.mxu0 0.0
    %546 = vmatprep.subr.mxu0 0.0
    %547 = vmatpush2.msra.mxu0 0.0
    %548 = vmatprep.subr.mxu0 0.0
    %549 = vmatpush2.msra.mxu0 0.0
    %550 = vmatprep.mubr.f32.mxu0 0.0
    %551 = vmatmul.mubr.f32.gmra.mxu0 %v139
    %v552 = vpop.f32.mrf.mxu0
    %v553 = vadd.f32 0.0, %v552
    %v554 = vpop.f32.mrf.mxu0
    %555 = vmatprep.mubr.f32.mxu0 0.0
    %556 = vmatmul.mubr.f32.gmra.mxu0 %v142
    %v557 = vpop.f32.mrf.mxu0
    %v558 = vadd.f32 0.0, %v557
    %v559 = vpop.f32.mrf.mxu0
    %560 = vdwg.mxu0
    %v562 = vsel %vm331, %v478, 0
    %v565 = vsel %vm331, %v483, 0
    %v568 = vsel %vm331, %v553, 0
    %v571 = vsel %vm331, %v558, 0
    %573 = vmatprep.subr.mxu0 0.0
    %574 = vmatpush1.msra.mxu0 0.0
    %575 = vmatprep.subr.mxu0 0.0
    %576 = vmatpush1.msra.mxu0 0.0
    %577 = vmatprep.subr.mxu0 0.0
    %578 = vmatpush1.msra.mxu0 0.0
    %579 = vmatprep.subr.mxu0 0.0
    %580 = vmatpush1.msra.mxu0 0.0
    %581 = vmatprep.subr.mxu0 0.0
    %582 = vmatpush1.msra.mxu0 0.0
    %583 = vmatprep.subr.mxu0 0.0
    %584 = vmatpush1.msra.mxu0 0.0
    %585 = vmatprep.subr.mxu0 0.0
    %586 = vmatpush1.msra.mxu0 0.0
    %587 = vmatprep.subr.mxu0 0.0
    %588 = vmatpush1.msra.mxu0 0.0
    %589 = vmatprep.subr.mxu0 0.0
    %590 = vmatpush1.msra.mxu0 0.0
    %591 = vmatprep.subr.mxu0 0.0
    %592 = vmatpush1.msra.mxu0 0.0
    %593 = vmatprep.subr.mxu0 0.0
    %594 = vmatpush1.msra.mxu0 0.0
    %595 = vmatprep.subr.mxu0 0.0
    %596 = vmatpush1.msra.mxu0 0.0
    %597 = vmatprep.subr.mxu0 0.0
    %598 = vmatpush1.msra.mxu0 %v409
    %599 = vmatprep.subr.mxu0 0.0
    %600 = vmatpush1.msra.mxu0 %v408
    %601 = vmatprep.subr.mxu0 0.0
    %602 = vmatpush1.msra.mxu0 %v407
    %603 = vmatprep.subr.mxu0 0.0
    %604 = vmatpush1.msra.mxu0 %v406
    %605 = vmatprep.subr.mxu0 0.0
    %606 = vmatpush2.msra.mxu0 0.0
    %607 = vmatprep.subr.mxu0 0.0
    %608 = vmatpush2.msra.mxu0 0.0
    %609 = vmatprep.subr.mxu0 0.0
    %610 = vmatpush2.msra.mxu0 0.0
    %611 = vmatprep.subr.mxu0 0.0
    %612 = vmatpush2.msra.mxu0 0.0
    %613 = vmatprep.subr.mxu0 0.0
    %614 = vmatpush2.msra.mxu0 0.0
    %615 = vmatprep.subr.mxu0 0.0
    %616 = vmatpush2.msra.mxu0 0.0
    %617 = vmatprep.subr.mxu0 0.0
    %618 = vmatpush2.msra.mxu0 0.0
    %619 = vmatprep.subr.mxu0 0.0
    %620 = vmatpush2.msra.mxu0 0.0
    %621 = vmatprep.subr.mxu0 0.0
    %622 = vmatpush2.msra.mxu0 0.0
    %623 = vmatprep.subr.mxu0 0.0
    %624 = vmatpush2.msra.mxu0 0.0
    %625 = vmatprep.subr.mxu0 0.0
    %626 = vmatpush2.msra.mxu0 0.0
    %627 = vmatprep.subr.mxu0 0.0
    %628 = vmatpush2.msra.mxu0 0.0
    %629 = vmatprep.subr.mxu0 0.0
    %630 = vmatpush2.msra.mxu0 0.0
    %631 = vmatprep.subr.mxu0 0.0
    %632 = vmatpush2.msra.mxu0 0.0
    %633 = vmatprep.subr.mxu0 0.0
    %634 = vmatpush2.msra.mxu0 0.0
    %635 = vmatprep.subr.mxu0 0.0
    %636 = vmatpush2.msra.mxu0 0.0
    %637 = vmatprep.mubr.f32.mxu0 0.0
    %638 = vmatmul.mubr.f32.gmra.mxu0 %v562
    %v639 = vpop.f32.mrf.mxu0
    %v640 = vadd.f32 0.0, %v639
    %v641 = vpop.f32.mrf.mxu0
    %642 = vmatprep.mubr.f32.mxu0 0.0
    %643 = vmatmul.mubr.f32.gmra.mxu0 %v565
    %v644 = vpop.f32.mrf.mxu0
    %v645 = vadd.f32 0.0, %v644
    %v646 = vpop.f32.mrf.mxu0
    %647 = vmatprep.mubr.f32.mxu0 0.0
    %648 = vmatmul.mubr.f32.gmra.mxu0 %v568
    %v649 = vpop.f32.mrf.mxu0
    %v650 = vadd.f32 0.0, %v649
    %v651 = vpop.f32.mrf.mxu0
    %652 = vmatprep.mubr.f32.mxu0 0.0
    %653 = vmatmul.mubr.f32.gmra.mxu0 %v571
    %v654 = vpop.f32.mrf.mxu0
    %v655 = vadd.f32 0.0, %v654
    %v656 = vpop.f32.mrf.mxu0
    %657 = vdwg.mxu0
    %v659 = vlaneseq
    %v660 = vshrl.u32 %v659, 7
    %v661 = vsub.s32 0, %v660
    %v662 = vrot.slane %v410, %v661
    %v664 = vadd.f32 %v640, %v662
    %v665 = vadd.f32 %v645, %v662
    %v666 = vadd.f32 %v650, %v662
    %v667 = vadd.f32 %v655, %v662
    %v668 = vmul.f32 %v664, %v664
    %v669 = vmul.f32 %v665, %v665
    %v670 = vmul.f32 %v666, %v666
    %v671 = vmul.f32 %v667, %v667
    %v672 = vsel %vm331, %v668, 0.0
    %673 = vadd.xlane.f32.xlu0 %v672
    %v674 = vpop.xlane.xlu0 %673
    %v675 = vsel %vm331, %v669, 0.0
    %676 = vadd.xlane.f32.xlu0 %v675
    %v677 = vpop.xlane.xlu0 %676
    %v678 = vsel %vm331, %v670, 0.0
    %679 = vadd.xlane.f32.xlu0 %v678
    %v680 = vpop.xlane.xlu0 %679
    %v681 = vsel %vm331, %v671, 0.0
    %682 = vadd.xlane.f32.xlu0 %v681
    %v683 = vpop.xlane.xlu0 %682
    %v684 = vmax.f32 %v674, 1e-24
    %v685 = vmax.f32 %v677, 1e-24
    %v686 = vmax.f32 %v680, 1e-24
    %v687 = vmax.f32 %v683, 1e-24
    %v688 = vrsqrt.pop %v684
    %v689 = vrsqrt.pop %v685
    %v690 = vrsqrt.pop %v686
    %v691 = vrsqrt.pop %v687
    %v692 = vmul.f32 %v664, %v688
    %v693 = vmul.f32 %v665, %v689
    %v694 = vmul.f32 %v666, %v690
    %v695 = vmul.f32 %v667, %v691
    %v696 = vmax.f32 %v692, 0.0
    %v697 = vmax.f32 %v693, 0.0
    %v698 = vmax.f32 %v694, 0.0
    %v699 = vmax.f32 %v695, 0.0
    %v700 = vsel %vm331, %v696, 0.0
    %v701 = vsel %vm331, %v698, 0.0
    %v702 = vadd.f32 %v700, %v701
    %703 = vadd.xlane.f32.xlu0 %v702
    %v704 = vpop.xlane.xlu0 %703
    %v705 = vsel %vm331, %v697, 0.0
    %v706 = vsel %vm331, %v699, 0.0
    %v707 = vadd.f32 %v705, %v706
    %708 = vadd.xlane.f32.xlu0 %v707
    %v709 = vpop.xlane.xlu0 %708
    %v710 = vmul.f32 %v696, %v696
    %v711 = vmul.f32 %v697, %v697
    %v712 = vmul.f32 %v698, %v698
    %v713 = vmul.f32 %v699, %v699
    %v714 = vsel %vm331, %v710, 0.0
    %v715 = vsel %vm331, %v712, 0.0
    %v716 = vadd.f32 %v714, %v715
    %717 = vadd.xlane.f32.xlu0 %v716
    %v718 = vpop.xlane.xlu0 %717
    %v719 = vsel %vm331, %v711, 0.0
    %v720 = vsel %vm331, %v713, 0.0
    %v721 = vadd.f32 %v719, %v720
    %722 = vadd.xlane.f32.xlu0 %v721
    %v723 = vpop.xlane.xlu0 %722
    %v724 = vmul.f32 %v704, 0.015625
    %v725 = vmul.f32 %v709, 0.015625
    %v726 = vmul.f32 %v718, 0.015625
    %v727 = vmul.f32 %v723, 0.015625
    %v728 = vmul.f32 %v724, %v724
    %v729 = vmul.f32 %v725, %v725
    %v730 = vsub.f32 %v726, %v728
    %v731 = vsub.f32 %v727, %v729
    %v732 = vmax.f32 %v730, 0.0
    %v733 = vmax.f32 %v731, 0.0
    %v734 = vsub.f32 %v696, %v724
    %v735 = vsub.f32 %v697, %v725
    %v736 = vsub.f32 %v698, %v724
    %v737 = vsub.f32 %v699, %v725
    %v738 = vadd.f32 %v732, 1e-05
    %v739 = vadd.f32 %v733, 1e-05
    %v740 = vrsqrt.pop %v738
    %v741 = vrsqrt.pop %v739
    %v742 = vmul.f32 %v734, %v740
    %v743 = vmul.f32 %v735, %v741
    %v744 = vmul.f32 %v736, %v740
    %v745 = vmul.f32 %v737, %v741
    %v747 = vsel %vm331, %v742, 0
    %v750 = vsel %vm331, %v743, 0
    %v753 = vsel %vm331, %v744, 0
    %v756 = vsel %vm331, %v745, 0
    %758 = vmatprep.subr.mxu0 0.0
    %759 = vmatpush1.msra.mxu0 0.0
    %760 = vmatprep.subr.mxu0 0.0
    %761 = vmatpush1.msra.mxu0 0.0
    %762 = vmatprep.subr.mxu0 0.0
    %763 = vmatpush1.msra.mxu0 0.0
    %764 = vmatprep.subr.mxu0 0.0
    %765 = vmatpush1.msra.mxu0 0.0
    %766 = vmatprep.subr.mxu0 0.0
    %767 = vmatpush1.msra.mxu0 0.0
    %768 = vmatprep.subr.mxu0 0.0
    %769 = vmatpush1.msra.mxu0 0.0
    %770 = vmatprep.subr.mxu0 0.0
    %771 = vmatpush1.msra.mxu0 0.0
    %772 = vmatprep.subr.mxu0 0.0
    %773 = vmatpush1.msra.mxu0 0.0
    %774 = vmatprep.subr.mxu0 0.0
    %775 = vmatpush1.msra.mxu0 0.0
    %776 = vmatprep.subr.mxu0 0.0
    %777 = vmatpush1.msra.mxu0 0.0
    %778 = vmatprep.subr.mxu0 0.0
    %779 = vmatpush1.msra.mxu0 0.0
    %780 = vmatprep.subr.mxu0 0.0
    %781 = vmatpush1.msra.mxu0 0.0
    %782 = vmatprep.subr.mxu0 0.0
    %783 = vmatpush1.msra.mxu0 %v51
    %784 = vmatprep.subr.mxu0 0.0
    %785 = vmatpush1.msra.mxu0 %v50
    %786 = vmatprep.subr.mxu0 0.0
    %787 = vmatpush1.msra.mxu0 %v49
    %788 = vmatprep.subr.mxu0 0.0
    %789 = vmatpush1.msra.mxu0 %v48
    %790 = vmatprep.subr.mxu0 0.0
    %791 = vmatpush2.msra.mxu0 0.0
    %792 = vmatprep.subr.mxu0 0.0
    %793 = vmatpush2.msra.mxu0 0.0
    %794 = vmatprep.subr.mxu0 0.0
    %795 = vmatpush2.msra.mxu0 0.0
    %796 = vmatprep.subr.mxu0 0.0
    %797 = vmatpush2.msra.mxu0 0.0
    %798 = vmatprep.subr.mxu0 0.0
    %799 = vmatpush2.msra.mxu0 0.0
    %800 = vmatprep.subr.mxu0 0.0
    %801 = vmatpush2.msra.mxu0 0.0
    %802 = vmatprep.subr.mxu0 0.0
    %803 = vmatpush2.msra.mxu0 0.0
    %804 = vmatprep.subr.mxu0 0.0
    %805 = vmatpush2.msra.mxu0 0.0
    %806 = vmatprep.subr.mxu0 0.0
    %807 = vmatpush2.msra.mxu0 0.0
    %808 = vmatprep.subr.mxu0 0.0
    %809 = vmatpush2.msra.mxu0 0.0
    %810 = vmatprep.subr.mxu0 0.0
    %811 = vmatpush2.msra.mxu0 0.0
    %812 = vmatprep.subr.mxu0 0.0
    %813 = vmatpush2.msra.mxu0 0.0
    %814 = vmatprep.subr.mxu0 0.0
    %815 = vmatpush2.msra.mxu0 0.0
    %816 = vmatprep.subr.mxu0 0.0
    %817 = vmatpush2.msra.mxu0 0.0
    %818 = vmatprep.subr.mxu0 0.0
    %819 = vmatpush2.msra.mxu0 0.0
    %820 = vmatprep.subr.mxu0 0.0
    %821 = vmatpush2.msra.mxu0 0.0
    %822 = vmatprep.mubr.f32.mxu0 0.0
    %823 = vmatmul.mubr.f32.gmra.mxu0 %v747
    %v824 = vpop.f32.mrf.mxu0
    %v825 = vadd.f32 0.0, %v824
    %v826 = vpop.f32.mrf.mxu0
    %827 = vmatprep.mubr.f32.mxu0 0.0
    %828 = vmatmul.mubr.f32.gmra.mxu0 %v750
    %v829 = vpop.f32.mrf.mxu0
    %v830 = vadd.f32 0.0, %v829
    %v831 = vpop.f32.mrf.mxu0
    %832 = vmatprep.mubr.f32.mxu0 0.0
    %833 = vmatmul.mubr.f32.gmra.mxu0 %v753
    %v834 = vpop.f32.mrf.mxu0
    %v835 = vadd.f32 0.0, %v834
    %v836 = vpop.f32.mrf.mxu0
    %837 = vmatprep.mubr.f32.mxu0 0.0
    %838 = vmatmul.mubr.f32.gmra.mxu0 %v756
    %v839 = vpop.f32.mrf.mxu0
    %v840 = vadd.f32 0.0, %v839
    %v841 = vpop.f32.mrf.mxu0
    %842 = vdwg.mxu0
    %v844 = vsel %vm331, %v402, 0
    %v847 = vsel %vm331, %v403, 0
    %v850 = vsel %vm331, %v404, 0
    %v853 = vsel %vm331, %v405, 0
    %855 = vmatprep.subr.mxu0 0.0
    %856 = vmatpush1.msra.mxu0 0.0
    %857 = vmatprep.subr.mxu0 0.0
    %858 = vmatpush1.msra.mxu0 0.0
    %859 = vmatprep.subr.mxu0 0.0
    %860 = vmatpush1.msra.mxu0 0.0
    %861 = vmatprep.subr.mxu0 0.0
    %862 = vmatpush1.msra.mxu0 0.0
    %863 = vmatprep.subr.mxu0 0.0
    %864 = vmatpush1.msra.mxu0 0.0
    %865 = vmatprep.subr.mxu0 0.0
    %866 = vmatpush1.msra.mxu0 0.0
    %867 = vmatprep.subr.mxu0 0.0
    %868 = vmatpush1.msra.mxu0 0.0
    %869 = vmatprep.subr.mxu0 0.0
    %870 = vmatpush1.msra.mxu0 0.0
    %871 = vmatprep.subr.mxu0 0.0
    %872 = vmatpush1.msra.mxu0 0.0
    %873 = vmatprep.subr.mxu0 0.0
    %874 = vmatpush1.msra.mxu0 0.0
    %875 = vmatprep.subr.mxu0 0.0
    %876 = vmatpush1.msra.mxu0 0.0
    %877 = vmatprep.subr.mxu0 0.0
    %878 = vmatpush1.msra.mxu0 0.0
    %879 = vmatprep.subr.mxu0 0.0
    %880 = vmatpush1.msra.mxu0 %v47
    %881 = vmatprep.subr.mxu0 0.0
    %882 = vmatpush1.msra.mxu0 %v46
    %883 = vmatprep.subr.mxu0 0.0
    %884 = vmatpush1.msra.mxu0 %v45
    %885 = vmatprep.subr.mxu0 0.0
    %886 = vmatpush1.msra.mxu0 %v44
    %887 = vmatprep.subr.mxu0 0.0
    %888 = vmatpush2.msra.mxu0 0.0
    %889 = vmatprep.subr.mxu0 0.0
    %890 = vmatpush2.msra.mxu0 0.0
    %891 = vmatprep.subr.mxu0 0.0
    %892 = vmatpush2.msra.mxu0 0.0
    %893 = vmatprep.subr.mxu0 0.0
    %894 = vmatpush2.msra.mxu0 0.0
    %895 = vmatprep.subr.mxu0 0.0
    %896 = vmatpush2.msra.mxu0 0.0
    %897 = vmatprep.subr.mxu0 0.0
    %898 = vmatpush2.msra.mxu0 0.0
    %899 = vmatprep.subr.mxu0 0.0
    %900 = vmatpush2.msra.mxu0 0.0
    %901 = vmatprep.subr.mxu0 0.0
    %902 = vmatpush2.msra.mxu0 0.0
    %903 = vmatprep.subr.mxu0 0.0
    %904 = vmatpush2.msra.mxu0 0.0
    %905 = vmatprep.subr.mxu0 0.0
    %906 = vmatpush2.msra.mxu0 0.0
    %907 = vmatprep.subr.mxu0 0.0
    %908 = vmatpush2.msra.mxu0 0.0
    %909 = vmatprep.subr.mxu0 0.0
    %910 = vmatpush2.msra.mxu0 0.0
    %911 = vmatprep.subr.mxu0 0.0
    %912 = vmatpush2.msra.mxu0 0.0
    %913 = vmatprep.subr.mxu0 0.0
    %914 = vmatpush2.msra.mxu0 0.0
    %915 = vmatprep.subr.mxu0 0.0
    %916 = vmatpush2.msra.mxu0 0.0
    %917 = vmatprep.subr.mxu0 0.0
    %918 = vmatpush2.msra.mxu0 0.0
    %919 = vmatprep.mubr.f32.mxu0 0.0
    %920 = vmatmul.mubr.f32.gmra.mxu0 %v844
    %v921 = vpop.f32.mrf.mxu0
    %v922 = vadd.f32 %v825, %v921
    %v923 = vpop.f32.mrf.mxu0
    %924 = vmatprep.mubr.f32.mxu0 0.0
    %925 = vmatmul.mubr.f32.gmra.mxu0 %v847
    %v926 = vpop.f32.mrf.mxu0
    %v927 = vadd.f32 %v830, %v926
    %v928 = vpop.f32.mrf.mxu0
    %929 = vmatprep.mubr.f32.mxu0 0.0
    %930 = vmatmul.mubr.f32.gmra.mxu0 %v850
    %v931 = vpop.f32.mrf.mxu0
    %v932 = vadd.f32 %v835, %v931
    %v933 = vpop.f32.mrf.mxu0
    %934 = vmatprep.mubr.f32.mxu0 0.0
    %935 = vmatmul.mubr.f32.gmra.mxu0 %v853
    %v936 = vpop.f32.mrf.mxu0
    %v937 = vadd.f32 %v840, %v936
    %v938 = vpop.f32.mrf.mxu0
    %939 = vdwg.mxu0
    %v940 = vld [vmem:[%s6] sm:$0xff]
    %v941 = vld [vmem:[%s6 + $0x8] sm:$0xff]
    %v942 = vld [vmem:[%s6 + $0x10] sm:$0xff]
    %v943 = vld [vmem:[%s6 + $0x18] sm:$0xff]
    %v944 = vld [vmem:[%s7] sm:$0x1]
    %945 = vmatprep.subr.mxu0 0.0
    %946 = vmatpush1.msra.mxu0 0.0
    %947 = vmatprep.subr.mxu0 0.0
    %948 = vmatpush1.msra.mxu0 0.0
    %949 = vmatprep.subr.mxu0 0.0
    %950 = vmatpush1.msra.mxu0 0.0
    %951 = vmatprep.subr.mxu0 0.0
    %952 = vmatpush1.msra.mxu0 0.0
    %953 = vmatprep.subr.mxu0 0.0
    %954 = vmatpush1.msra.mxu0 0.0
    %955 = vmatprep.subr.mxu0 0.0
    %956 = vmatpush1.msra.mxu0 0.0
    %957 = vmatprep.subr.mxu0 0.0
    %958 = vmatpush1.msra.mxu0 0.0
    %959 = vmatprep.subr.mxu0 0.0
    %960 = vmatpush1.msra.mxu0 0.0
    %961 = vmatprep.subr.mxu0 0.0
    %962 = vmatpush1.msra.mxu0 0.0
    %963 = vmatprep.subr.mxu0 0.0
    %964 = vmatpush1.msra.mxu0 0.0
    %965 = vmatprep.subr.mxu0 0.0
    %966 = vmatpush1.msra.mxu0 0.0
    %967 = vmatprep.subr.mxu0 0.0
    %968 = vmatpush1.msra.mxu0 0.0
    %969 = vmatprep.subr.mxu0 0.0
    %970 = vmatpush1.msra.mxu0 0.0
    %971 = vmatprep.subr.mxu0 0.0
    %972 = vmatpush1.msra.mxu0 0.0
    %973 = vmatprep.subr.mxu0 0.0
    %974 = vmatpush1.msra.mxu0 %v743
    %975 = vmatprep.subr.mxu0 0.0
    %976 = vmatpush1.msra.mxu0 %v742
    %977 = vmatprep.subr.mxu0 0.0
    %978 = vmatpush2.msra.mxu0 0.0
    %979 = vmatprep.subr.mxu0 0.0
    %980 = vmatpush2.msra.mxu0 0.0
    %981 = vmatprep.subr.mxu0 0.0
    %982 = vmatpush2.msra.mxu0 0.0
    %983 = vmatprep.subr.mxu0 0.0
    %984 = vmatpush2.msra.mxu0 0.0
    %985 = vmatprep.subr.mxu0 0.0
    %986 = vmatpush2.msra.mxu0 0.0
    %987 = vmatprep.subr.mxu0 0.0
    %988 = vmatpush2.msra.mxu0 0.0
    %989 = vmatprep.subr.mxu0 0.0
    %990 = vmatpush2.msra.mxu0 0.0
    %991 = vmatprep.subr.mxu0 0.0
    %992 = vmatpush2.msra.mxu0 0.0
    %993 = vmatprep.subr.mxu0 0.0
    %994 = vmatpush2.msra.mxu0 0.0
    %995 = vmatprep.subr.mxu0 0.0
    %996 = vmatpush2.msra.mxu0 0.0
    %997 = vmatprep.subr.mxu0 0.0
    %998 = vmatpush2.msra.mxu0 0.0
    %999 = vmatprep.subr.mxu0 0.0
    %1000 = vmatpush2.msra.mxu0 0.0
    %1001 = vmatprep.subr.mxu0 0.0
    %1002 = vmatpush2.msra.mxu0 0.0
    %1003 = vmatprep.subr.mxu0 0.0
    %1004 = vmatpush2.msra.mxu0 0.0
    %1005 = vmatprep.subr.mxu0 0.0
    %1006 = vmatpush2.msra.mxu0 0.0
    %1007 = vmatprep.subr.mxu0 0.0
    %1008 = vmatpush2.msra.mxu0 0.0
    %1009 = vmatprep.mubr.f32.mxu0 0.0
    %1010 = vmatmul.mubr.f32.gmra.mxu0 %v58
    %v1011 = vpop.f32.mrf.mxu0
    %v1012 = vadd.f32 0.0, %v1011
    %v1013 = vpop.f32.mrf.mxu0
    %1014 = vmatprep.mubr.f32.mxu0 0.0
    %1015 = vmatmul.mubr.f32.gmra.mxu0 %v61
    %v1016 = vpop.f32.mrf.mxu0
    %v1017 = vadd.f32 0.0, %v1016
    %v1018 = vpop.f32.mrf.mxu0
    %1019 = vdwg.mxu0
    %1020 = vmatprep.subr.mxu0 0.0
    %1021 = vmatpush1.msra.mxu0 0.0
    %1022 = vmatprep.subr.mxu0 0.0
    %1023 = vmatpush1.msra.mxu0 0.0
    %1024 = vmatprep.subr.mxu0 0.0
    %1025 = vmatpush1.msra.mxu0 0.0
    %1026 = vmatprep.subr.mxu0 0.0
    %1027 = vmatpush1.msra.mxu0 0.0
    %1028 = vmatprep.subr.mxu0 0.0
    %1029 = vmatpush1.msra.mxu0 0.0
    %1030 = vmatprep.subr.mxu0 0.0
    %1031 = vmatpush1.msra.mxu0 0.0
    %1032 = vmatprep.subr.mxu0 0.0
    %1033 = vmatpush1.msra.mxu0 0.0
    %1034 = vmatprep.subr.mxu0 0.0
    %1035 = vmatpush1.msra.mxu0 0.0
    %1036 = vmatprep.subr.mxu0 0.0
    %1037 = vmatpush1.msra.mxu0 0.0
    %1038 = vmatprep.subr.mxu0 0.0
    %1039 = vmatpush1.msra.mxu0 0.0
    %1040 = vmatprep.subr.mxu0 0.0
    %1041 = vmatpush1.msra.mxu0 0.0
    %1042 = vmatprep.subr.mxu0 0.0
    %1043 = vmatpush1.msra.mxu0 0.0
    %1044 = vmatprep.subr.mxu0 0.0
    %1045 = vmatpush1.msra.mxu0 0.0
    %1046 = vmatprep.subr.mxu0 0.0
    %1047 = vmatpush1.msra.mxu0 0.0
    %1048 = vmatprep.subr.mxu0 0.0
    %1049 = vmatpush1.msra.mxu0 %v745
    %1050 = vmatprep.subr.mxu0 0.0
    %1051 = vmatpush1.msra.mxu0 %v744
    %1052 = vmatprep.subr.mxu0 0.0
    %1053 = vmatpush2.msra.mxu0 0.0
    %1054 = vmatprep.subr.mxu0 0.0
    %1055 = vmatpush2.msra.mxu0 0.0
    %1056 = vmatprep.subr.mxu0 0.0
    %1057 = vmatpush2.msra.mxu0 0.0
    %1058 = vmatprep.subr.mxu0 0.0
    %1059 = vmatpush2.msra.mxu0 0.0
    %1060 = vmatprep.subr.mxu0 0.0
    %1061 = vmatpush2.msra.mxu0 0.0
    %1062 = vmatprep.subr.mxu0 0.0
    %1063 = vmatpush2.msra.mxu0 0.0
    %1064 = vmatprep.subr.mxu0 0.0
    %1065 = vmatpush2.msra.mxu0 0.0
    %1066 = vmatprep.subr.mxu0 0.0
    %1067 = vmatpush2.msra.mxu0 0.0
    %1068 = vmatprep.subr.mxu0 0.0
    %1069 = vmatpush2.msra.mxu0 0.0
    %1070 = vmatprep.subr.mxu0 0.0
    %1071 = vmatpush2.msra.mxu0 0.0
    %1072 = vmatprep.subr.mxu0 0.0
    %1073 = vmatpush2.msra.mxu0 0.0
    %1074 = vmatprep.subr.mxu0 0.0
    %1075 = vmatpush2.msra.mxu0 0.0
    %1076 = vmatprep.subr.mxu0 0.0
    %1077 = vmatpush2.msra.mxu0 0.0
    %1078 = vmatprep.subr.mxu0 0.0
    %1079 = vmatpush2.msra.mxu0 0.0
    %1080 = vmatprep.subr.mxu0 0.0
    %1081 = vmatpush2.msra.mxu0 0.0
    %1082 = vmatprep.subr.mxu0 0.0
    %1083 = vmatpush2.msra.mxu0 0.0
    %1084 = vmatprep.mubr.f32.mxu0 0.0
    %1085 = vmatmul.mubr.f32.gmra.mxu0 %v139
    %v1086 = vpop.f32.mrf.mxu0
    %v1087 = vadd.f32 0.0, %v1086
    %v1088 = vpop.f32.mrf.mxu0
    %1089 = vmatprep.mubr.f32.mxu0 0.0
    %1090 = vmatmul.mubr.f32.gmra.mxu0 %v142
    %v1091 = vpop.f32.mrf.mxu0
    %v1092 = vadd.f32 0.0, %v1091
    %v1093 = vpop.f32.mrf.mxu0
    %1094 = vdwg.mxu0
    %v1096 = vsel %vm331, %v1012, 0
    %v1099 = vsel %vm331, %v1017, 0
    %v1102 = vsel %vm331, %v1087, 0
    %v1105 = vsel %vm331, %v1092, 0
    %1107 = vmatprep.subr.mxu0 0.0
    %1108 = vmatpush1.msra.mxu0 0.0
    %1109 = vmatprep.subr.mxu0 0.0
    %1110 = vmatpush1.msra.mxu0 0.0
    %1111 = vmatprep.subr.mxu0 0.0
    %1112 = vmatpush1.msra.mxu0 0.0
    %1113 = vmatprep.subr.mxu0 0.0
    %1114 = vmatpush1.msra.mxu0 0.0
    %1115 = vmatprep.subr.mxu0 0.0
    %1116 = vmatpush1.msra.mxu0 0.0
    %1117 = vmatprep.subr.mxu0 0.0
    %1118 = vmatpush1.msra.mxu0 0.0
    %1119 = vmatprep.subr.mxu0 0.0
    %1120 = vmatpush1.msra.mxu0 0.0
    %1121 = vmatprep.subr.mxu0 0.0
    %1122 = vmatpush1.msra.mxu0 0.0
    %1123 = vmatprep.subr.mxu0 0.0
    %1124 = vmatpush1.msra.mxu0 0.0
    %1125 = vmatprep.subr.mxu0 0.0
    %1126 = vmatpush1.msra.mxu0 0.0
    %1127 = vmatprep.subr.mxu0 0.0
    %1128 = vmatpush1.msra.mxu0 0.0
    %1129 = vmatprep.subr.mxu0 0.0
    %1130 = vmatpush1.msra.mxu0 0.0
    %1131 = vmatprep.subr.mxu0 0.0
    %1132 = vmatpush1.msra.mxu0 %v943
    %1133 = vmatprep.subr.mxu0 0.0
    %1134 = vmatpush1.msra.mxu0 %v942
    %1135 = vmatprep.subr.mxu0 0.0
    %1136 = vmatpush1.msra.mxu0 %v941
    %1137 = vmatprep.subr.mxu0 0.0
    %1138 = vmatpush1.msra.mxu0 %v940
    %1139 = vmatprep.subr.mxu0 0.0
    %1140 = vmatpush2.msra.mxu0 0.0
    %1141 = vmatprep.subr.mxu0 0.0
    %1142 = vmatpush2.msra.mxu0 0.0
    %1143 = vmatprep.subr.mxu0 0.0
    %1144 = vmatpush2.msra.mxu0 0.0
    %1145 = vmatprep.subr.mxu0 0.0
    %1146 = vmatpush2.msra.mxu0 0.0
    %1147 = vmatprep.subr.mxu0 0.0
    %1148 = vmatpush2.msra.mxu0 0.0
    %1149 = vmatprep.subr.mxu0 0.0
    %1150 = vmatpush2.msra.mxu0 0.0
    %1151 = vmatprep.subr.mxu0 0.0
    %1152 = vmatpush2.msra.mxu0 0.0
    %1153 = vmatprep.subr.mxu0 0.0
    %1154 = vmatpush2.msra.mxu0 0.0
    %1155 = vmatprep.subr.mxu0 0.0
    %1156 = vmatpush2.msra.mxu0 0.0
    %1157 = vmatprep.subr.mxu0 0.0
    %1158 = vmatpush2.msra.mxu0 0.0
    %1159 = vmatprep.subr.mxu0 0.0
    %1160 = vmatpush2.msra.mxu0 0.0
    %1161 = vmatprep.subr.mxu0 0.0
    %1162 = vmatpush2.msra.mxu0 0.0
    %1163 = vmatprep.subr.mxu0 0.0
    %1164 = vmatpush2.msra.mxu0 0.0
    %1165 = vmatprep.subr.mxu0 0.0
    %1166 = vmatpush2.msra.mxu0 0.0
    %1167 = vmatprep.subr.mxu0 0.0
    %1168 = vmatpush2.msra.mxu0 0.0
    %1169 = vmatprep.subr.mxu0 0.0
    %1170 = vmatpush2.msra.mxu0 0.0
    %1171 = vmatprep.mubr.f32.mxu0 0.0
    %1172 = vmatmul.mubr.f32.gmra.mxu0 %v1096
    %v1173 = vpop.f32.mrf.mxu0
    %v1174 = vadd.f32 0.0, %v1173
    %v1175 = vpop.f32.mrf.mxu0
    %1176 = vmatprep.mubr.f32.mxu0 0.0
    %1177 = vmatmul.mubr.f32.gmra.mxu0 %v1099
    %v1178 = vpop.f32.mrf.mxu0
    %v1179 = vadd.f32 0.0, %v1178
    %v1180 = vpop.f32.mrf.mxu0
    %1181 = vmatprep.mubr.f32.mxu0 0.0
    %1182 = vmatmul.mubr.f32.gmra.mxu0 %v1102
    %v1183 = vpop.f32.mrf.mxu0
    %v1184 = vadd.f32 0.0, %v1183
    %v1185 = vpop.f32.mrf.mxu0
    %1186 = vmatprep.mubr.f32.mxu0 0.0
    %1187 = vmatmul.mubr.f32.gmra.mxu0 %v1105
    %v1188 = vpop.f32.mrf.mxu0
    %v1189 = vadd.f32 0.0, %v1188
    %v1190 = vpop.f32.mrf.mxu0
    %1191 = vdwg.mxu0
    %v1193 = vlaneseq
    %v1194 = vshrl.u32 %v1193, 7
    %v1195 = vsub.s32 0, %v1194
    %v1196 = vrot.slane %v944, %v1195
    %v1198 = vadd.f32 %v1174, %v1196
    %v1199 = vadd.f32 %v1179, %v1196
    %v1200 = vadd.f32 %v1184, %v1196
    %v1201 = vadd.f32 %v1189, %v1196
    %v1202 = vmul.f32 %v1198, %v1198
    %v1203 = vmul.f32 %v1199, %v1199
    %v1204 = vmul.f32 %v1200, %v1200
    %v1205 = vmul.f32 %v1201, %v1201
    %v1206 = vsel %vm56, %v1202, 0.0
    %1207 = vadd.xlane.f32.xlu0 %v1206
    %v1208 = vpop.xlane.xlu0 %1207
    %v1209 = vsel %vm56, %v1203, 0.0
    %1210 = vadd.xlane.f32.xlu0 %v1209
    %v1211 = vpop.xlane.xlu0 %1210
    %v1212 = vsel %vm56, %v1204, 0.0
    %1213 = vadd.xlane.f32.xlu0 %v1212
    %v1214 = vpop.xlane.xlu0 %1213
    %v1215 = vsel %vm56, %v1205, 0.0
    %1216 = vadd.xlane.f32.xlu0 %v1215
    %v1217 = vpop.xlane.xlu0 %1216
    %v1218 = vmax.f32 %v1208, 1e-24
    %v1219 = vmax.f32 %v1211, 1e-24
    %v1220 = vmax.f32 %v1214, 1e-24
    %v1221 = vmax.f32 %v1217, 1e-24
    %v1222 = vrsqrt.pop %v1218
    %v1223 = vrsqrt.pop %v1219
    %v1224 = vrsqrt.pop %v1220
    %v1225 = vrsqrt.pop %v1221
    %v1226 = vmul.f32 %v1198, %v1222
    %v1227 = vmul.f32 %v1199, %v1223
    %v1228 = vmul.f32 %v1200, %v1224
    %v1229 = vmul.f32 %v1201, %v1225
    %v1231 = vsel %vm56, %v1226, 0
    %v1234 = vsel %vm56, %v1227, 0
    %v1237 = vsel %vm56, %v1228, 0
    %v1240 = vsel %vm56, %v1229, 0
    %1242 = vmatprep.subr.mxu0 0.0
    %1243 = vmatpush1.msra.mxu0 0.0
    %1244 = vmatprep.subr.mxu0 0.0
    %1245 = vmatpush1.msra.mxu0 0.0
    %1246 = vmatprep.subr.mxu0 0.0
    %1247 = vmatpush1.msra.mxu0 0.0
    %1248 = vmatprep.subr.mxu0 0.0
    %1249 = vmatpush1.msra.mxu0 0.0
    %1250 = vmatprep.subr.mxu0 0.0
    %1251 = vmatpush1.msra.mxu0 0.0
    %1252 = vmatprep.subr.mxu0 0.0
    %1253 = vmatpush1.msra.mxu0 0.0
    %1254 = vmatprep.subr.mxu0 0.0
    %1255 = vmatpush1.msra.mxu0 0.0
    %1256 = vmatprep.subr.mxu0 0.0
    %1257 = vmatpush1.msra.mxu0 0.0
    %1258 = vmatprep.subr.mxu0 0.0
    %1259 = vmatpush1.msra.mxu0 0.0
    %1260 = vmatprep.subr.mxu0 0.0
    %1261 = vmatpush1.msra.mxu0 0.0
    %1262 = vmatprep.subr.mxu0 0.0
    %1263 = vmatpush1.msra.mxu0 0.0
    %1264 = vmatprep.subr.mxu0 0.0
    %1265 = vmatpush1.msra.mxu0 0.0
    %1266 = vmatprep.subr.mxu0 0.0
    %1267 = vmatpush1.msra.mxu0 0.0
    %1268 = vmatprep.subr.mxu0 0.0
    %1269 = vmatpush1.msra.mxu0 0.0
    %1270 = vmatprep.subr.mxu0 0.0
    %1271 = vmatpush1.msra.mxu0 %v53
    %1272 = vmatprep.subr.mxu0 0.0
    %1273 = vmatpush1.msra.mxu0 %v52
    %1274 = vmatprep.subr.mxu0 0.0
    %1275 = vmatpush2.msra.mxu0 0.0
    %1276 = vmatprep.subr.mxu0 0.0
    %1277 = vmatpush2.msra.mxu0 0.0
    %1278 = vmatprep.subr.mxu0 0.0
    %1279 = vmatpush2.msra.mxu0 0.0
    %1280 = vmatprep.subr.mxu0 0.0
    %1281 = vmatpush2.msra.mxu0 0.0
    %1282 = vmatprep.subr.mxu0 0.0
    %1283 = vmatpush2.msra.mxu0 0.0
    %1284 = vmatprep.subr.mxu0 0.0
    %1285 = vmatpush2.msra.mxu0 0.0
    %1286 = vmatprep.subr.mxu0 0.0
    %1287 = vmatpush2.msra.mxu0 0.0
    %1288 = vmatprep.subr.mxu0 0.0
    %1289 = vmatpush2.msra.mxu0 0.0
    %1290 = vmatprep.subr.mxu0 0.0
    %1291 = vmatpush2.msra.mxu0 0.0
    %1292 = vmatprep.subr.mxu0 0.0
    %1293 = vmatpush2.msra.mxu0 0.0
    %1294 = vmatprep.subr.mxu0 0.0
    %1295 = vmatpush2.msra.mxu0 0.0
    %1296 = vmatprep.subr.mxu0 0.0
    %1297 = vmatpush2.msra.mxu0 0.0
    %1298 = vmatprep.subr.mxu0 0.0
    %1299 = vmatpush2.msra.mxu0 0.0
    %1300 = vmatprep.subr.mxu0 0.0
    %1301 = vmatpush2.msra.mxu0 0.0
    %1302 = vmatprep.subr.mxu0 0.0
    %1303 = vmatpush2.msra.mxu0 0.0
    %1304 = vmatprep.subr.mxu0 0.0
    %1305 = vmatpush2.msra.mxu0 0.0
    %1306 = vmatprep.mubr.f32.mxu0 0.0
    %1307 = vmatmul.mubr.f32.gmra.mxu0 %v1231
    %v1308 = vpop.f32.mrf.mxu0
    %v1309 = vadd.f32 0.0, %v1308
    %v1310 = vpop.f32.mrf.mxu0
    %1311 = vmatprep.mubr.f32.mxu0 0.0
    %1312 = vmatmul.mubr.f32.gmra.mxu0 %v1234
    %v1313 = vpop.f32.mrf.mxu0
    %v1314 = vadd.f32 0.0, %v1313
    %v1315 = vpop.f32.mrf.mxu0
    %1316 = vmatprep.mubr.f32.mxu0 0.0
    %1317 = vmatmul.mubr.f32.gmra.mxu0 %v1237
    %v1318 = vpop.f32.mrf.mxu0
    %v1319 = vadd.f32 0.0, %v1318
    %v1320 = vpop.f32.mrf.mxu0
    %1321 = vmatprep.mubr.f32.mxu0 0.0
    %1322 = vmatmul.mubr.f32.gmra.mxu0 %v1240
    %v1323 = vpop.f32.mrf.mxu0
    %v1324 = vadd.f32 0.0, %v1323
    %v1325 = vpop.f32.mrf.mxu0
    %1326 = vdwg.mxu0
    %v1327 = vadd.f32 %v922, %v1309
    %v1328 = vadd.f32 %v927, %v1314
    %v1329 = vadd.f32 %v932, %v1319
    %v1330 = vadd.f32 %v937, %v1324
    %v1331 = vld [vmem:[%s9] sm:$0x1]
    %v1333 = vlaneseq
    %v1334 = vshrl.u32 %v1333, 7
    %v1335 = vsub.s32 0, %v1334
    %v1336 = vrot.slane %v1331, %v1335
    %v1338 = vadd.f32 %v1327, %v1336
    %v1339 = vadd.f32 %v1328, %v1336
    %v1340 = vadd.f32 %v1329, %v1336
    %v1341 = vadd.f32 %v1330, %v1336
    %1342 = vxpose.xlu0.b32.start [1/16] %v1338, 128
    %1343 = vxpose.xlu0.b32.cont [2/16] %v1339, 128
    %1344 = vxpose.xlu0.b32.cont [3/16] %v1340, 128
    %1345 = vxpose.xlu0.b32.cont [4/16] %v1341, 128
    %1346 = vxpose.xlu0.b32.cont [5/16] 0.0, 128
    %1347 = vxpose.xlu0.b32.cont [6/16] 0.0, 128
    %1348 = vxpose.xlu0.b32.cont [7/16] 0.0, 128
    %1349 = vxpose.xlu0.b32.cont [8/16] 0.0, 128
    %1350 = vxpose.xlu0.b32.cont [9/16] 0.0, 128
    %1351 = vxpose.xlu0.b32.cont [10/16] 0.0, 128
    %1352 = vxpose.xlu0.b32.cont [11/16] 0.0, 128
    %1353 = vxpose.xlu0.b32.cont [12/16] 0.0, 128
    %1354 = vxpose.xlu0.b32.cont [13/16] 0.0, 128
    %1355 = vxpose.xlu0.b32.cont [14/16] 0.0, 128
    %1356 = vxpose.xlu0.b32.cont [15/16] 0.0, 128
    %1357 = vxpose.xlu0.b32.end [16/16] 0.0, 128
    %v1358 = vpop.trf.xlu0
    %v1359 = vpop.trf.xlu0
    %v1360 = vpop.trf.xlu0
    %v1361 = vpop.trf.xlu0
    %v1362 = vpop.trf.xlu0
    %v1363 = vpop.trf.xlu0
    %v1364 = vpop.trf.xlu0
    %v1365 = vpop.trf.xlu0
    %v1366 = vpop.trf.xlu0
    %v1367 = vpop.trf.xlu0
    %v1368 = vpop.trf.xlu0
    %v1369 = vpop.trf.xlu0
    %v1370 = vpop.trf.xlu0
    %v1371 = vpop.trf.xlu0
    %v1372 = vpop.trf.xlu0
    %v1373 = vpop.trf.xlu0
    %vm1374 = vcmask 257024
    %1375 = vst.msk [vmem:[#allocation2] sm:$0xf] %vm1374, %v1358
    // Predicated region
    $region42: #{tpu_custom_call.1} parent=1 // pred_check
      _
    $region43: #{tpu_custom_call.1} parent=1 // pred_check_branch
      %1377 = sbr.rel (0) target = $region45
    $region44: #{tpu_custom_call.1} parent=1 // pred_region
      %s1379 = ssub.s32 64, 64
      %1380 = vsyncadd [#allocation3], %s1379
      %s1382 = sshll.u32 [#allocation2], 4
      %s1383 = int_to_ptr.vmem [resolvable:$true] %s1382
      %1385 = dma.vmem_to_hbm [thread:$0]  %s1383, 64, %s10, [#allocation3]
    $region45: #{tpu_custom_call.1} parent=1 // pred_fallthru
      _
    // Predicated region
    $region46: #{tpu_custom_call.1} parent=1 // pred_check
      _
    $region47: #{tpu_custom_call.1} parent=1 // pred_check_branch
      %1387 = sbr.rel (0) target = $region49
    $region48: #{tpu_custom_call.1} parent=1 // pred_region
      %1388 = dma.done [#allocation3], 64
    $region49: #{tpu_custom_call.1} parent=1 // pred_fallthru
      _
    %1389 = vsyncpa [#allocation3], 1

</llo_original>
